<compile_context>
chip_gen: v5e
topology: v5e:2x2
jax: 0.10.0
libtpu: 0.0.40
codegen_flags: <defaults>
</compile_context>

<pallas_src>
import functools

import numpy as np
import jax
import jax.numpy as jnp
from jax.experimental import pallas as pl
from jax.experimental.pallas import tpu as pltpu


# ----------------------------------------------------------------------------
# Host-side constants
# ----------------------------------------------------------------------------
def _interp_matrix_np(out_size, in_size):
    """PyTorch-compatible 1-D bilinear (align_corners=False) interp matrix."""
    m = np.zeros((out_size, in_size), np.float32)
    scale = in_size / out_size
    for d in range(out_size):
        s = (d + 0.5) * scale - 0.5
        s = min(max(s, 0.0), in_size - 1.0)
        i0 = int(np.floor(s))
        i1 = min(i0 + 1, in_size - 1)
        f = s - i0
        m[d, i0] += 1.0 - f
        m[d, i1] += f
    return m


def _upsample_matrix(H, W, h, w):
    """(h*w, H*W) matrix U such that taps_lo @ U == bilinear-resized tap maps."""
    mh = _interp_matrix_np(H, h)                       # (H, h)
    mw = _interp_matrix_np(W, w)                       # (W, w)
    return jnp.asarray(np.kron(mh, mw).T)              # (h*w, H*W), f32


def _tap_premasks(H, W):
    """(16, H*W) pre-roll validity masks implementing the conv's zero padding."""
    HW = H * W
    masks = np.zeros((16, HW), np.float32)
    q = np.arange(HW)
    k = 0
    for dh in (-1, 0, 1):
        for dw in (-1, 0, 1):
            off = dh * W + dw
            p = (q - off) % HW                 # output pixel this element reaches after roll
            r, c = p // W, p % W
            valid = (r + dh >= 0) & (r + dh < H) & (c + dw >= 0) & (c + dw < W)
            masks[k] = valid.astype(np.float32)
            k += 1
    return jnp.asarray(masks)


# ----------------------------------------------------------------------------
# Fused kernel.
# Grid = (2, NB):  phase 0 -> BN batch statistics, phase 1 -> conv/sigmoid/BN/
# ReLU/gate.  Both axes 'arbitrary' (stats couple the whole batch).
# ----------------------------------------------------------------------------
def _spatial_att_kernel(dec_ref, enc_ref, w_ref, up_ref, mask_ref,
                        gamma_ref, beta_ref, cbias_ref, out_ref,
                        sum_ref, ssq_ref, scale_ref, shift_ref,
                        *, H, W, Bb, n_count):
    HW = H * W
    phase = pl.program_id(0)
    blk = pl.program_id(1)
    n_blk = pl.num_programs(1)

    # ---------------- phase 0: per-channel batch statistics -----------------
    @pl.when(phase == 0)
    def _stats():
        @pl.when(blk == 0)
        def _():
            sum_ref[...] = jnp.zeros_like(sum_ref)
            ssq_ref[...] = jnp.zeros_like(ssq_ref)

        for i in range(Bb):                              # static, unrolled
            x = enc_ref[i]                               # (C, HW) f32
            sum_ref[...] += jnp.sum(x, axis=1, keepdims=True)
            ssq_ref[...] += jnp.sum(x * x, axis=1, keepdims=True)

        @pl.when(blk == n_blk - 1)
        def _fold():                                     # mean/var -> scale/shift
            inv_n = 1.0 / n_count
            mean = sum_ref[...] * inv_n
            var = jnp.maximum(ssq_ref[...] * inv_n - mean * mean, 0.0)
            scale = gamma_ref[...] * jax.lax.rsqrt(var + 1e-5)
            scale_ref[...] = scale
            shift_ref[...] = beta_ref[...] - mean * scale

    # ------ phase 1: conv(+upsample) -> sigmoid gate, BN affine + ReLU ------
    @pl.when(phase == 1)
    def _apply():
        scale = scale_ref[...]                           # (C, 1) f32
        shift = shift_ref[...]                           # (C, 1) f32
        cbias = cbias_ref[0, 0]                          # SMEM scalar
        w = w_ref[...]                                   # (16, C) bf16 (rows>=9 zero)
        up = up_ref[...]                                 # (hw, HW) f32
        mask = mask_ref[...]                             # (16, HW) f32

        for i in range(Bb):                              # static, unrolled
            # channel reduction for all 9 taps at once (MXU, bf16 x bf16 -> f32)
            taps_lo = jnp.dot(w, dec_ref[i],
                              preferred_element_type=jnp.float32)   # (16, hw)
            # bilinear upsample of the 9 tap maps (MXU, f32)
            taps_hi = jnp.dot(taps_lo, up,
                              preferred_element_type=jnp.float32)   # (16, HW)
            # zero-padding border masks (pre-roll formulation): one multiply
            taps_hi = taps_hi * mask
            # combine the 9 taps with lane rolls (== padding=1 3x3 conv)
            acc = taps_hi[4:5, :]                        # centre tap (dh=0, dw=0)
            k = 0
            for dh in (-1, 0, 1):
                for dw in (-1, 0, 1):
                    off = dh * W + dw
                    if off != 0:
                        acc = acc + pltpu.roll(taps_hi[k:k + 1, :],
                                               shift=(-off) % HW, axis=1)
                    k += 1
            sa = jax.nn.sigmoid(acc + cbias)             # (1, HW) f32

            enc = enc_ref[i]                             # (C, HW) f32
            out_ref[i] = jnp.maximum(enc * scale + shift, 0.0) * sa


# ----------------------------------------------------------------------------
# Forward wrapper
# ----------------------------------------------------------------------------
def spatial_att_forward(params, the_enc, last_dec):
    B, C, H, W = the_enc.shape
    _, _, h, w = last_dec.shape
    HW, hw = H * W, h * w
    # NOTE: for production maps whose H*W is not a multiple of 128, pad HW in
    # this wrapper so output stores stay lane-dense (HW=256 in the test is fine).

    enc_r = the_enc.reshape(B, C, HW)
    dec_r = last_dec.reshape(B, C, hw).astype(jnp.bfloat16)   # bf16 dec path in HBM

    # conv weight, tap-major (k = (dh+1)*3 + (dw+1)), padded to 16 rows, bf16
    w_taps = params['conv_w'].reshape(C, 9).T                 # (9, C)
    w16 = jnp.pad(w_taps, ((0, 7), (0, 0))).astype(jnp.bfloat16)
    cbias = params['conv_b'].reshape(1, 1).astype(jnp.float32)
    gamma = params['bn_gamma'].reshape(C, 1).astype(jnp.float32)
    beta = params['bn_beta'].reshape(C, 1).astype(jnp.float32)

    up = _upsample_matrix(H, W, h, w)                         # (hw, HW) f32
    premask = _tap_premasks(H, W)                             # (16, HW) f32
    # TODO(synk): for very large feature maps, replace the kron upsample matrix
    # (O(h*w*H*W)) with two separable (H,h)/(W,w) dots inside the kernel.

    # ---- batch blocking: largest Bb whose double-buffered blocks fit budget ----
    img_bytes = C * HW * 4 * 2 + C * hw * 2          # enc + out (f32) + dec (bf16)
    const_bytes = hw * HW * 4 + 16 * HW * 4          # upsample matrix + tap masks
    budget = 24 * 1024 * 1024                        # block budget, v7x (64 MiB VMEM) safe
    Bb = int(max(1, min(B, (budget - const_bytes) // max(1, 2 * img_bytes))))
    while B % Bb:
        Bb -= 1
    NB = B // Bb

    out = pl.pallas_call(
        functools.partial(_spatial_att_kernel, H=H, W=W, Bb=Bb,
                          n_count=float(B * HW)),
        out_shape=jax.ShapeDtypeStruct((B, C, HW), jnp.float32),
        grid_spec=pltpu.PrefetchScalarGridSpec(
            num_scalar_prefetch=0,
            grid=(2, NB),                              # (phase, batch block)
            in_specs=[
                # dec/out use (p*b): block index constant through phase 0, so the
                # tiny dec block is fetched once and no garbage output block is
                # ever written back; each output block is stored exactly once.
                pl.BlockSpec((Bb, C, hw), lambda p, b: (p * b, 0, 0)),   # dec (bf16)
                pl.BlockSpec((Bb, C, HW), lambda p, b: (b, 0, 0)),       # enc (f32)
                pl.BlockSpec((16, C), lambda p, b: (0, 0)),              # conv taps (bf16)
                pl.BlockSpec((hw, HW), lambda p, b: (0, 0)),             # upsample matrix
                pl.BlockSpec((16, HW), lambda p, b: (0, 0)),             # border masks
                pl.BlockSpec((C, 1), lambda p, b: (0, 0)),               # bn gamma
                pl.BlockSpec((C, 1), lambda p, b: (0, 0)),               # bn beta
                pl.BlockSpec(memory_space=pltpu.MemorySpace.SMEM),       # conv bias scalar
            ],
            out_specs=pl.BlockSpec((Bb, C, HW), lambda p, b: (p * b, 0, 0)),
            scratch_shapes=[
                pltpu.VMEM((C, 1), jnp.float32),       # sum
                pltpu.VMEM((C, 1), jnp.float32),       # sum of squares
                pltpu.VMEM((C, 1), jnp.float32),       # folded BN scale
                pltpu.VMEM((C, 1), jnp.float32),       # folded BN shift
            ]),
        compiler_params=pltpu.CompilerParams(
            # batch stats couple all batch blocks -> both axes must stay 'arbitrary'
            dimension_semantics=("arbitrary", "arbitrary"),
            vmem_limit_bytes=48 * 1024 * 1024),
    )(dec_r, enc_r, w16, up, premask, gamma, beta, cbias)

    return out.reshape(B, C, H, W)


# ----------------------------------------------------------------------------
# Pure-JAX reference (for correctness check)
# ----------------------------------------------------------------------------
def _bilinear_resize(x, out_h, out_w):
    _, _, h, w = x.shape
    if (h, w) == (out_h, out_w):
        return x
    mh = jnp.asarray(_interp_matrix_np(out_h, h))
    mw = jnp.asarray(_interp_matrix_np(out_w, w))
    return jnp.einsum('Hh,bchw,Ww->bcHW', mh, x, mw)


def spatial_att_reference(params, the_enc, last_dec):
    B, C, H, W = the_enc.shape
    dec_up = _bilinear_resize(last_dec, H, W)
    sa = jax.lax.conv_general_dilated(
        dec_up, params['conv_w'], window_strides=(1, 1),
        padding=((1, 1), (1, 1)),
        dimension_numbers=('NCHW', 'OIHW', 'NCHW'),
        precision=jax.lax.Precision.HIGHEST)
    sa = jax.nn.sigmoid(sa + params['conv_b'].reshape(1, 1, 1, 1))
    mean = jnp.mean(the_enc, axis=(0, 2, 3), keepdims=True)
    var = jnp.mean((the_enc - mean) ** 2, axis=(0, 2, 3), keepdims=True)
    enc = (the_enc - mean) * jax.lax.rsqrt(var + 1e-5)
    enc = enc * params['bn_gamma'].reshape(1, C, 1, 1) \
              + params['bn_beta'].reshape(1, C, 1, 1)
    enc = jnp.maximum(enc, 0.0)
    return enc * sa


if __name__ == "__main__":
    B, C, H, W = 2, 64, 16, 16       # channel count fixed to 64 by the module
    h, w = 8, 8                      # decoder map at lower resolution

    key = jax.random.PRNGKey(0)
    kx, kd, kw, kb, kg, kbe = jax.random.split(key, 6)
    the_enc = jax.random.normal(kx, (B, C, H, W), jnp.float32)
    last_dec = jax.random.normal(kd, (B, C, h, w), jnp.float32)
    params = {
        'conv_w': jax.random.normal(kw, (1, C, 3, 3), jnp.float32)
                  * (2.0 / (C * 9)) ** 0.5,
        'conv_b': 0.1 * jax.random.normal(kb, (1,), jnp.float32),
        'bn_gamma': 1.0 + 0.1 * jax.random.normal(kg, (C,), jnp.float32),
        'bn_beta': 0.1 * jax.random.normal(kbe, (C,), jnp.float32),
    }

    fwd = jax.jit(spatial_att_forward)
    out = jax.block_until_ready(fwd(params, the_enc, last_dec))
    assert out.shape == (B, C, H, W)

    ref = jax.block_until_ready(spatial_att_reference(params, the_enc, last_dec))
    err = float(jnp.max(jnp.abs(out - ref)))
    # bf16 MXU operands (f32 accumulation) in the conv head -> loose tolerance.
    assert err < 5e-2, f"max abs err {err}"
    print("KERNEL_OK")
</pallas_src>

<mosaic_0001>
module attributes {stable_mosaic.version = 11 : i64} {
  func.func @_spatial_att_kernel(%arg0: i32, %arg1: i32, %arg2: memref<2x64x64xbf16, #tpu.memory_space<vmem>>, %arg3: memref<2x64x256xf32, #tpu.memory_space<vmem>>, %arg4: memref<16x64xbf16, #tpu.memory_space<vmem>>, %arg5: memref<64x256xf32, #tpu.memory_space<vmem>>, %arg6: memref<16x256xf32, #tpu.memory_space<vmem>>, %arg7: memref<64x1xf32, #tpu.memory_space<vmem>>, %arg8: memref<64x1xf32, #tpu.memory_space<vmem>>, %arg9: memref<1x1xf32, #tpu.memory_space<smem>>, %arg10: memref<2x64x256xf32, #tpu.memory_space<vmem>>, %arg11: memref<64x1xf32, #tpu.memory_space<vmem>>, %arg12: memref<64x1xf32, #tpu.memory_space<vmem>>, %arg13: memref<64x1xf32, #tpu.memory_space<vmem>>, %arg14: memref<64x1xf32, #tpu.memory_space<vmem>>) attributes {dimension_semantics = [#tpu.dimension_semantics<arbitrary>, #tpu.dimension_semantics<arbitrary>], iteration_bounds = array<i64: 2, 1>, scalar_prefetch = 0 : i64, scratch_operands = 4 : i64, tpu.core_type = #tpu.core_type<tc>, window_params = [{transform_indices = @transform_0, window_bounds = array<i64: 2, 64, 64>}, {transform_indices = @transform_1, window_bounds = array<i64: 2, 64, 256>}, {pipeline_mode = #tpu.pipeline_mode<synchronous>, transform_indices = @transform_2, window_bounds = array<i64: 16, 64>}, {pipeline_mode = #tpu.pipeline_mode<synchronous>, transform_indices = @transform_3, window_bounds = array<i64: 64, 256>}, {pipeline_mode = #tpu.pipeline_mode<synchronous>, transform_indices = @transform_4, window_bounds = array<i64: 16, 256>}, {pipeline_mode = #tpu.pipeline_mode<synchronous>, transform_indices = @transform_5, window_bounds = array<i64: 64, 1>}, {pipeline_mode = #tpu.pipeline_mode<synchronous>, transform_indices = @transform_6, window_bounds = array<i64: 64, 1>}, {transform_indices = @transform_7, window_bounds = array<i64: 1, 1>}, {transform_indices = @transform_8, window_bounds = array<i64: 2, 64, 256>}]} {
    %c0_i32 = arith.constant 0 : i32
    %0 = arith.cmpi eq, %arg0, %c0_i32 : i32
    %1 = arith.extui %0 : i1 to i32
    %c0_i32_0 = arith.constant 0 : i32
    %2 = arith.cmpi ne, %1, %c0_i32_0 : i32
    scf.if %2 {
      %c0_i32_2 = arith.constant 0 : i32
      %6 = arith.cmpi eq, %arg1, %c0_i32_2 : i32
      %7 = arith.extui %6 : i1 to i32
      %c0_i32_3 = arith.constant 0 : i32
      %8 = arith.cmpi ne, %7, %c0_i32_3 : i32
      scf.if %8 {
        %cst_29 = arith.constant 0.000000e+00 : f32
        %38 = vector.broadcast %cst_29 : f32 to vector<64x1xf32>
        %c0_30 = arith.constant 0 : index
        %c0_31 = arith.constant 0 : index
        %39 = vector.load %arg11[%c0_30, %c0_31] : memref<64x1xf32, #tpu.memory_space<vmem>>, vector<64x1xf32>
        tpu.vector_store %arg11[%c0_30, %c0_31], %38 {strides = array<i32>} : memref<64x1xf32, #tpu.memory_space<vmem>>, vector<64x1xf32>,
        %cst_32 = arith.constant 0.000000e+00 : f32
        %40 = vector.broadcast %cst_32 : f32 to vector<64x1xf32>
        %c0_33 = arith.constant 0 : index
        %c0_34 = arith.constant 0 : index
        %41 = vector.load %arg12[%c0_33, %c0_34] : memref<64x1xf32, #tpu.memory_space<vmem>>, vector<64x1xf32>
        tpu.vector_store %arg12[%c0_33, %c0_34], %40 {strides = array<i32>} : memref<64x1xf32, #tpu.memory_space<vmem>>, vector<64x1xf32>,
      } else {
      }
      %c0 = arith.constant 0 : index
      %c0_4 = arith.constant 0 : index
      %c0_5 = arith.constant 0 : index
      %9 = vector.load %arg3[%c0, %c0_4, %c0_5] : memref<2x64x256xf32, #tpu.memory_space<vmem>>, vector<1x64x256xf32>
      %10 = vector.shape_cast %9 : vector<1x64x256xf32> to vector<64x256xf32>
      %c0_6 = arith.constant 0 : index
      %c0_7 = arith.constant 0 : index
      %11 = vector.load %arg11[%c0_6, %c0_7] : memref<64x1xf32, #tpu.memory_space<vmem>>, vector<64x1xf32>
      %cst = arith.constant dense<0.000000e+00> : vector<64xf32>
      %12 = vector.multi_reduction <add>, %10, %cst [1] : vector<64x256xf32> to vector<64xf32>
      %13 = vector.shape_cast %12 : vector<64xf32> to vector<64x1xf32>
      %14 = arith.addf %11, %13 : vector<64x1xf32>
      %c0_8 = arith.constant 0 : index
      %c0_9 = arith.constant 0 : index
      %15 = vector.load %arg11[%c0_8, %c0_9] : memref<64x1xf32, #tpu.memory_space<vmem>>, vector<64x1xf32>
      tpu.vector_store %arg11[%c0_8, %c0_9], %14 {strides = array<i32>} : memref<64x1xf32, #tpu.memory_space<vmem>>, vector<64x1xf32>,
      %c0_10 = arith.constant 0 : index
      %c0_11 = arith.constant 0 : index
      %16 = vector.load %arg12[%c0_10, %c0_11] : memref<64x1xf32, #tpu.memory_space<vmem>>, vector<64x1xf32>
      %17 = arith.mulf %10, %10 : vector<64x256xf32>
      %cst_12 = arith.constant dense<0.000000e+00> : vector<64xf32>
      %18 = vector.multi_reduction <add>, %17, %cst_12 [1] : vector<64x256xf32> to vector<64xf32>
      %19 = vector.shape_cast %18 : vector<64xf32> to vector<64x1xf32>
      %20 = arith.addf %16, %19 : vector<64x1xf32>
      %c0_13 = arith.constant 0 : index
      %c0_14 = arith.constant 0 : index
      %21 = vector.load %arg12[%c0_13, %c0_14] : memref<64x1xf32, #tpu.memory_space<vmem>>, vector<64x1xf32>
      tpu.vector_store %arg12[%c0_13, %c0_14], %20 {strides = array<i32>} : memref<64x1xf32, #tpu.memory_space<vmem>>, vector<64x1xf32>,
      %c1 = arith.constant 1 : index
      %c0_15 = arith.constant 0 : index
      %c0_16 = arith.constant 0 : index
      %22 = vector.load %arg3[%c1, %c0_15, %c0_16] : memref<2x64x256xf32, #tpu.memory_space<vmem>>, vector<1x64x256xf32>
      %23 = vector.shape_cast %22 : vector<1x64x256xf32> to vector<64x256xf32>
      %c0_17 = arith.constant 0 : index
      %c0_18 = arith.constant 0 : index
      %24 = vector.load %arg11[%c0_17, %c0_18] : memref<64x1xf32, #tpu.memory_space<vmem>>, vector<64x1xf32>
      %cst_19 = arith.constant dense<0.000000e+00> : vector<64xf32>
      %25 = vector.multi_reduction <add>, %23, %cst_19 [1] : vector<64x256xf32> to vector<64xf32>
      %26 = vector.shape_cast %25 : vector<64xf32> to vector<64x1xf32>
      %27 = arith.addf %24, %26 : vector<64x1xf32>
      %c0_20 = arith.constant 0 : index
      %c0_21 = arith.constant 0 : index
      %28 = vector.load %arg11[%c0_20, %c0_21] : memref<64x1xf32, #tpu.memory_space<vmem>>, vector<64x1xf32>
      tpu.vector_store %arg11[%c0_20, %c0_21], %27 {strides = array<i32>} : memref<64x1xf32, #tpu.memory_space<vmem>>, vector<64x1xf32>,
      %c0_22 = arith.constant 0 : index
      %c0_23 = arith.constant 0 : index
      %29 = vector.load %arg12[%c0_22, %c0_23] : memref<64x1xf32, #tpu.memory_space<vmem>>, vector<64x1xf32>
      %30 = arith.mulf %23, %23 : vector<64x256xf32>
      %cst_24 = arith.constant dense<0.000000e+00> : vector<64xf32>
      %31 = vector.multi_reduction <add>, %30, %cst_24 [1] : vector<64x256xf32> to vector<64xf32>
      %32 = vector.shape_cast %31 : vector<64xf32> to vector<64x1xf32>
      %33 = arith.addf %29, %32 : vector<64x1xf32>
      %c0_25 = arith.constant 0 : index
      %c0_26 = arith.constant 0 : index
      %34 = vector.load %arg12[%c0_25, %c0_26] : memref<64x1xf32, #tpu.memory_space<vmem>>, vector<64x1xf32>
      tpu.vector_store %arg12[%c0_25, %c0_26], %33 {strides = array<i32>} : memref<64x1xf32, #tpu.memory_space<vmem>>, vector<64x1xf32>,
      %c0_i32_27 = arith.constant 0 : i32
      %35 = arith.cmpi eq, %arg1, %c0_i32_27 : i32
      %36 = arith.extui %35 : i1 to i32
      %c0_i32_28 = arith.constant 0 : i32
      %37 = arith.cmpi ne, %36, %c0_i32_28 : i32
      scf.if %37 {
        %c0_29 = arith.constant 0 : index
        %c0_30 = arith.constant 0 : index
        %38 = vector.load %arg11[%c0_29, %c0_30] : memref<64x1xf32, #tpu.memory_space<vmem>>, vector<64x1xf32>
        %cst_31 = arith.constant 0.001953125 : f32
        %39 = vector.broadcast %cst_31 : f32 to vector<64x1xf32>
        %40 = arith.mulf %38, %39 : vector<64x1xf32>
        %c0_32 = arith.constant 0 : index
        %c0_33 = arith.constant 0 : index
        %41 = vector.load %arg12[%c0_32, %c0_33] : memref<64x1xf32, #tpu.memory_space<vmem>>, vector<64x1xf32>
        %cst_34 = arith.constant 0.001953125 : f32
        %42 = vector.broadcast %cst_34 : f32 to vector<64x1xf32>
        %43 = arith.mulf %41, %42 : vector<64x1xf32>
        %44 = arith.mulf %40, %40 : vector<64x1xf32>
        %45 = arith.subf %43, %44 : vector<64x1xf32>
        %cst_35 = arith.constant 0.000000e+00 : f32
        %46 = vector.broadcast %cst_35 : f32 to vector<64x1xf32>
        %47 = arith.maximumf %45, %46 : vector<64x1xf32>
        %c0_36 = arith.constant 0 : index
        %c0_37 = arith.constant 0 : index
        %48 = vector.load %arg7[%c0_36, %c0_37] : memref<64x1xf32, #tpu.memory_space<vmem>>, vector<64x1xf32>
        %cst_38 = arith.constant 9.99999974E-6 : f32
        %49 = vector.broadcast %cst_38 : f32 to vector<64x1xf32>
        %50 = arith.addf %47, %49 : vector<64x1xf32>
        %51 = math.rsqrt %50 : vector<64x1xf32>
        %52 = arith.mulf %48, %51 : vector<64x1xf32>
        %c0_39 = arith.constant 0 : index
        %c0_40 = arith.constant 0 : index
        %53 = vector.load %arg13[%c0_39, %c0_40] : memref<64x1xf32, #tpu.memory_space<vmem>>, vector<64x1xf32>
        tpu.vector_store %arg13[%c0_39, %c0_40], %52 {strides = array<i32>} : memref<64x1xf32, #tpu.memory_space<vmem>>, vector<64x1xf32>,
        %c0_41 = arith.constant 0 : index
        %c0_42 = arith.constant 0 : index
        %54 = vector.load %arg8[%c0_41, %c0_42] : memref<64x1xf32, #tpu.memory_space<vmem>>, vector<64x1xf32>
        %55 = arith.mulf %40, %52 : vector<64x1xf32>
        %56 = arith.subf %54, %55 : vector<64x1xf32>
        %c0_43 = arith.constant 0 : index
        %c0_44 = arith.constant 0 : index
        %57 = vector.load %arg14[%c0_43, %c0_44] : memref<64x1xf32, #tpu.memory_space<vmem>>, vector<64x1xf32>
        tpu.vector_store %arg14[%c0_43, %c0_44], %56 {strides = array<i32>} : memref<64x1xf32, #tpu.memory_space<vmem>>, vector<64x1xf32>,
      } else {
      }
    } else {
    }
    %c1_i32 = arith.constant 1 : i32
    %3 = arith.cmpi eq, %arg0, %c1_i32 : i32
    %4 = arith.extui %3 : i1 to i32
    %c0_i32_1 = arith.constant 0 : i32
    %5 = arith.cmpi ne, %4, %c0_i32_1 : i32
    scf.if %5 {
      %c0 = arith.constant 0 : index
      %c0_2 = arith.constant 0 : index
      %6 = vector.load %arg13[%c0, %c0_2] : memref<64x1xf32, #tpu.memory_space<vmem>>, vector<64x1xf32>
      %c0_3 = arith.constant 0 : index
      %c0_4 = arith.constant 0 : index
      %7 = vector.load %arg14[%c0_3, %c0_4] : memref<64x1xf32, #tpu.memory_space<vmem>>, vector<64x1xf32>
      %c0_5 = arith.constant 0 : index
      %c0_6 = arith.constant 0 : index
      %8 = memref.load %arg9[%c0_5, %c0_6] : memref<1x1xf32, #tpu.memory_space<smem>>
      %c0_7 = arith.constant 0 : index
      %c0_8 = arith.constant 0 : index
      %9 = vector.load %arg4[%c0_7, %c0_8] : memref<16x64xbf16, #tpu.memory_space<vmem>>, vector<16x64xbf16>
      %c0_9 = arith.constant 0 : index
      %c0_10 = arith.constant 0 : index
      %10 = vector.load %arg5[%c0_9, %c0_10] : memref<64x256xf32, #tpu.memory_space<vmem>>, vector<64x256xf32>
      %c0_11 = arith.constant 0 : index
      %c0_12 = arith.constant 0 : index
      %11 = vector.load %arg6[%c0_11, %c0_12] : memref<16x256xf32, #tpu.memory_space<vmem>>, vector<16x256xf32>
      %c0_13 = arith.constant 0 : index
      %c0_14 = arith.constant 0 : index
      %c0_15 = arith.constant 0 : index
      %12 = vector.load %arg2[%c0_13, %c0_14, %c0_15] : memref<2x64x64xbf16, #tpu.memory_space<vmem>>, vector<1x64x64xbf16>
      %13 = vector.shape_cast %12 : vector<1x64x64xbf16> to vector<64x64xbf16>
      %cst = arith.constant dense<0.000000e+00> : vector<16x64xf32>
      %14 = tpu.matmul %9, %13, %cst {dimension_numbers = #tpu.dot_dimension_numbers<[1], [0], [0], [1], [0, 0, 1, 1], [], []>} : vector<16x64xbf16>, vector<64x64xbf16>, vector<16x64xf32> -> vector<16x64xf32>
      %cst_16 = arith.constant dense<0.000000e+00> : vector<16x256xf32>
      %15 = tpu.matmul %14, %10, %cst_16 {dimension_numbers = #tpu.dot_dimension_numbers<[1], [0], [0], [1], [0, 0, 1, 1], [], []>} : vector<16x64xf32>, vector<64x256xf32>, vector<16x256xf32> -> vector<16x256xf32>
      %16 = arith.mulf %15, %11 : vector<16x256xf32>
      %17 = vector.extract_strided_slice %16 {offsets = [4, 0], sizes = [1, 256], strides = [1, 1]} : vector<16x256xf32> to vector<1x256xf32>
      %18 = vector.extract_strided_slice %16 {offsets = [0, 0], sizes = [1, 256], strides = [1, 1]} : vector<16x256xf32> to vector<1x256xf32>
      %c17_i32 = arith.constant 17 : i32
      %19 = tpu.dynamic_rotate %18 by %c17_i32 dim 1 : vector<1x256xf32>, i32 -> vector<1x256xf32>
      %20 = arith.addf %17, %19 : vector<1x256xf32>
      %21 = vector.extract_strided_slice %16 {offsets = [1, 0], sizes = [1, 256], strides = [1, 1]} : vector<16x256xf32> to vector<1x256xf32>
      %c16_i32 = arith.constant 16 : i32
      %22 = tpu.dynamic_rotate %21 by %c16_i32 dim 1 : vector<1x256xf32>, i32 -> vector<1x256xf32>
      %23 = arith.addf %20, %22 : vector<1x256xf32>
      %24 = vector.extract_strided_slice %16 {offsets = [2, 0], sizes = [1, 256], strides = [1, 1]} : vector<16x256xf32> to vector<1x256xf32>
      %c15_i32 = arith.constant 15 : i32
      %25 = tpu.dynamic_rotate %24 by %c15_i32 dim 1 : vector<1x256xf32>, i32 -> vector<1x256xf32>
      %26 = arith.addf %23, %25 : vector<1x256xf32>
      %27 = vector.extract_strided_slice %16 {offsets = [3, 0], sizes = [1, 256], strides = [1, 1]} : vector<16x256xf32> to vector<1x256xf32>
      %c1_i32_17 = arith.constant 1 : i32
      %28 = tpu.dynamic_rotate %27 by %c1_i32_17 dim 1 : vector<1x256xf32>, i32 -> vector<1x256xf32>
      %29 = arith.addf %26, %28 : vector<1x256xf32>
      %30 = vector.extract_strided_slice %16 {offsets = [5, 0], sizes = [1, 256], strides = [1, 1]} : vector<16x256xf32> to vector<1x256xf32>
      %c255_i32 = arith.constant 255 : i32
      %31 = tpu.dynamic_rotate %30 by %c255_i32 dim 1 : vector<1x256xf32>, i32 -> vector<1x256xf32>
      %32 = arith.addf %29, %31 : vector<1x256xf32>
      %33 = vector.extract_strided_slice %16 {offsets = [6, 0], sizes = [1, 256], strides = [1, 1]} : vector<16x256xf32> to vector<1x256xf32>
      %c241_i32 = arith.constant 241 : i32
      %34 = tpu.dynamic_rotate %33 by %c241_i32 dim 1 : vector<1x256xf32>, i32 -> vector<1x256xf32>
      %35 = arith.addf %32, %34 : vector<1x256xf32>
      %36 = vector.extract_strided_slice %16 {offsets = [7, 0], sizes = [1, 256], strides = [1, 1]} : vector<16x256xf32> to vector<1x256xf32>
      %c240_i32 = arith.constant 240 : i32
      %37 = tpu.dynamic_rotate %36 by %c240_i32 dim 1 : vector<1x256xf32>, i32 -> vector<1x256xf32>
      %38 = arith.addf %35, %37 : vector<1x256xf32>
      %39 = vector.extract_strided_slice %16 {offsets = [8, 0], sizes = [1, 256], strides = [1, 1]} : vector<16x256xf32> to vector<1x256xf32>
      %c239_i32 = arith.constant 239 : i32
      %40 = tpu.dynamic_rotate %39 by %c239_i32 dim 1 : vector<1x256xf32>, i32 -> vector<1x256xf32>
      %41 = arith.addf %38, %40 : vector<1x256xf32>
      %42 = vector.broadcast %8 : f32 to vector<1x256xf32>
      %43 = arith.addf %41, %42 : vector<1x256xf32>
      %44 = arith.negf %43 : vector<1x256xf32>
      %45 = math.exp %44 : vector<1x256xf32>
      %cst_18 = arith.constant 1.000000e+00 : f32
      %46 = vector.broadcast %cst_18 : f32 to vector<1x256xf32>
      %47 = arith.addf %46, %45 : vector<1x256xf32>
      %48 = arith.divf %46, %47 : vector<1x256xf32>
      %c0_19 = arith.constant 0 : index
      %c0_20 = arith.constant 0 : index
      %c0_21 = arith.constant 0 : index
      %49 = vector.load %arg3[%c0_19, %c0_20, %c0_21] : memref<2x64x256xf32, #tpu.memory_space<vmem>>, vector<1x64x256xf32>
      %50 = vector.shape_cast %49 : vector<1x64x256xf32> to vector<64x256xf32>
      %51 = vector.broadcast %6 : vector<64x1xf32> to vector<64x256xf32>
      %52 = arith.mulf %50, %51 : vector<64x256xf32>
      %53 = vector.broadcast %7 : vector<64x1xf32> to vector<64x256xf32>
      %54 = arith.addf %52, %53 : vector<64x256xf32>
      %cst_22 = arith.constant 0.000000e+00 : f32
      %55 = vector.broadcast %cst_22 : f32 to vector<64x256xf32>
      %56 = arith.maximumf %54, %55 : vector<64x256xf32>
      %57 = vector.broadcast %48 : vector<1x256xf32> to vector<64x256xf32>
      %58 = arith.mulf %56, %57 : vector<64x256xf32>
      %c0_23 = arith.constant 0 : index
      %c0_24 = arith.constant 0 : index
      %c0_25 = arith.constant 0 : index
      %59 = vector.load %arg10[%c0_23, %c0_24, %c0_25] : memref<2x64x256xf32, #tpu.memory_space<vmem>>, vector<1x64x256xf32>
      %60 = vector.shape_cast %59 : vector<1x64x256xf32> to vector<64x256xf32>
      %61 = vector.shape_cast %58 : vector<64x256xf32> to vector<1x64x256xf32>
      tpu.vector_store %arg10[%c0_23, %c0_24, %c0_25], %61 {strides = array<i32>} : memref<2x64x256xf32, #tpu.memory_space<vmem>>, vector<1x64x256xf32>,
      %c1 = arith.constant 1 : index
      %c0_26 = arith.constant 0 : index
      %c0_27 = arith.constant 0 : index
      %62 = vector.load %arg2[%c1, %c0_26, %c0_27] : memref<2x64x64xbf16, #tpu.memory_space<vmem>>, vector<1x64x64xbf16>
      %63 = vector.shape_cast %62 : vector<1x64x64xbf16> to vector<64x64xbf16>
      %cst_28 = arith.constant dense<0.000000e+00> : vector<16x64xf32>
      %64 = tpu.matmul %9, %63, %cst_28 {dimension_numbers = #tpu.dot_dimension_numbers<[1], [0], [0], [1], [0, 0, 1, 1], [], []>} : vector<16x64xbf16>, vector<64x64xbf16>, vector<16x64xf32> -> vector<16x64xf32>
      %cst_29 = arith.constant dense<0.000000e+00> : vector<16x256xf32>
      %65 = tpu.matmul %64, %10, %cst_29 {dimension_numbers = #tpu.dot_dimension_numbers<[1], [0], [0], [1], [0, 0, 1, 1], [], []>} : vector<16x64xf32>, vector<64x256xf32>, vector<16x256xf32> -> vector<16x256xf32>
      %66 = arith.mulf %65, %11 : vector<16x256xf32>
      %67 = vector.extract_strided_slice %66 {offsets = [4, 0], sizes = [1, 256], strides = [1, 1]} : vector<16x256xf32> to vector<1x256xf32>
      %68 = vector.extract_strided_slice %66 {offsets = [0, 0], sizes = [1, 256], strides = [1, 1]} : vector<16x256xf32> to vector<1x256xf32>
      %c17_i32_30 = arith.constant 17 : i32
      %69 = tpu.dynamic_rotate %68 by %c17_i32_30 dim 1 : vector<1x256xf32>, i32 -> vector<1x256xf32>
      %70 = arith.addf %67, %69 : vector<1x256xf32>
      %71 = vector.extract_strided_slice %66 {offsets = [1, 0], sizes = [1, 256], strides = [1, 1]} : vector<16x256xf32> to vector<1x256xf32>
      %c16_i32_31 = arith.constant 16 : i32
      %72 = tpu.dynamic_rotate %71 by %c16_i32_31 dim 1 : vector<1x256xf32>, i32 -> vector<1x256xf32>
      %73 = arith.addf %70, %72 : vector<1x256xf32>
      %74 = vector.extract_strided_slice %66 {offsets = [2, 0], sizes = [1, 256], strides = [1, 1]} : vector<16x256xf32> to vector<1x256xf32>
      %c15_i32_32 = arith.constant 15 : i32
      %75 = tpu.dynamic_rotate %74 by %c15_i32_32 dim 1 : vector<1x256xf32>, i32 -> vector<1x256xf32>
      %76 = arith.addf %73, %75 : vector<1x256xf32>
      %77 = vector.extract_strided_slice %66 {offsets = [3, 0], sizes = [1, 256], strides = [1, 1]} : vector<16x256xf32> to vector<1x256xf32>
      %c1_i32_33 = arith.constant 1 : i32
      %78 = tpu.dynamic_rotate %77 by %c1_i32_33 dim 1 : vector<1x256xf32>, i32 -> vector<1x256xf32>
      %79 = arith.addf %76, %78 : vector<1x256xf32>
      %80 = vector.extract_strided_slice %66 {offsets = [5, 0], sizes = [1, 256], strides = [1, 1]} : vector<16x256xf32> to vector<1x256xf32>
      %c255_i32_34 = arith.constant 255 : i32
      %81 = tpu.dynamic_rotate %80 by %c255_i32_34 dim 1 : vector<1x256xf32>, i32 -> vector<1x256xf32>
      %82 = arith.addf %79, %81 : vector<1x256xf32>
      %83 = vector.extract_strided_slice %66 {offsets = [6, 0], sizes = [1, 256], strides = [1, 1]} : vector<16x256xf32> to vector<1x256xf32>
      %c241_i32_35 = arith.constant 241 : i32
      %84 = tpu.dynamic_rotate %83 by %c241_i32_35 dim 1 : vector<1x256xf32>, i32 -> vector<1x256xf32>
      %85 = arith.addf %82, %84 : vector<1x256xf32>
      %86 = vector.extract_strided_slice %66 {offsets = [7, 0], sizes = [1, 256], strides = [1, 1]} : vector<16x256xf32> to vector<1x256xf32>
      %c240_i32_36 = arith.constant 240 : i32
      %87 = tpu.dynamic_rotate %86 by %c240_i32_36 dim 1 : vector<1x256xf32>, i32 -> vector<1x256xf32>
      %88 = arith.addf %85, %87 : vector<1x256xf32>
      %89 = vector.extract_strided_slice %66 {offsets = [8, 0], sizes = [1, 256], strides = [1, 1]} : vector<16x256xf32> to vector<1x256xf32>
      %c239_i32_37 = arith.constant 239 : i32
      %90 = tpu.dynamic_rotate %89 by %c239_i32_37 dim 1 : vector<1x256xf32>, i32 -> vector<1x256xf32>
      %91 = arith.addf %88, %90 : vector<1x256xf32>
      %92 = vector.broadcast %8 : f32 to vector<1x256xf32>
      %93 = arith.addf %91, %92 : vector<1x256xf32>
      %94 = arith.negf %93 : vector<1x256xf32>
      %95 = math.exp %94 : vector<1x256xf32>
      %cst_38 = arith.constant 1.000000e+00 : f32
      %96 = vector.broadcast %cst_38 : f32 to vector<1x256xf32>
      %97 = arith.addf %96, %95 : vector<1x256xf32>
      %98 = arith.divf %96, %97 : vector<1x256xf32>
      %c1_39 = arith.constant 1 : index
      %c0_40 = arith.constant 0 : index
      %c0_41 = arith.constant 0 : index
      %99 = vector.load %arg3[%c1_39, %c0_40, %c0_41] : memref<2x64x256xf32, #tpu.memory_space<vmem>>, vector<1x64x256xf32>
      %100 = vector.shape_cast %99 : vector<1x64x256xf32> to vector<64x256xf32>
      %101 = vector.broadcast %6 : vector<64x1xf32> to vector<64x256xf32>
      %102 = arith.mulf %100, %101 : vector<64x256xf32>
      %103 = vector.broadcast %7 : vector<64x1xf32> to vector<64x256xf32>
      %104 = arith.addf %102, %103 : vector<64x256xf32>
      %cst_42 = arith.constant 0.000000e+00 : f32
      %105 = vector.broadcast %cst_42 : f32 to vector<64x256xf32>
      %106 = arith.maximumf %104, %105 : vector<64x256xf32>
      %107 = vector.broadcast %98 : vector<1x256xf32> to vector<64x256xf32>
      %108 = arith.mulf %106, %107 : vector<64x256xf32>
      %c1_43 = arith.constant 1 : index
      %c0_44 = arith.constant 0 : index
      %c0_45 = arith.constant 0 : index
      %109 = vector.load %arg10[%c1_43, %c0_44, %c0_45] : memref<2x64x256xf32, #tpu.memory_space<vmem>>, vector<1x64x256xf32>
      %110 = vector.shape_cast %109 : vector<1x64x256xf32> to vector<64x256xf32>
      %111 = vector.shape_cast %108 : vector<64x256xf32> to vector<1x64x256xf32>
      tpu.vector_store %arg10[%c1_43, %c0_44, %c0_45], %111 {strides = array<i32>} : memref<2x64x256xf32, #tpu.memory_space<vmem>>, vector<1x64x256xf32>,
    } else {
    }
    return
  }
  func.func @transform_0(%arg0: i32, %arg1: i32) -> (i32, i32, i32) {
    %0 = arith.muli %arg0, %arg1 : i32
    %c0_i32 = arith.constant 0 : i32
    %c0_i32_0 = arith.constant 0 : i32
    %c0_i32_1 = arith.constant 0 : i32
    return %0, %c0_i32, %c0_i32_0 : i32, i32, i32
  }
  func.func @transform_1(%arg0: i32, %arg1: i32) -> (i32, i32, i32) {
    %c0_i32 = arith.constant 0 : i32
    %c0_i32_0 = arith.constant 0 : i32
    %c0_i32_1 = arith.constant 0 : i32
    return %arg1, %c0_i32, %c0_i32_0 : i32, i32, i32
  }
  func.func @transform_2(%arg0: i32, %arg1: i32) -> (i32, i32) {
    %c0_i32 = arith.constant 0 : i32
    %c0_i32_0 = arith.constant 0 : i32
    %c0_i32_1 = arith.constant 0 : i32
    return %c0_i32, %c0_i32_0 : i32, i32
  }
  func.func @transform_3(%arg0: i32, %arg1: i32) -> (i32, i32) {
    %c0_i32 = arith.constant 0 : i32
    %c0_i32_0 = arith.constant 0 : i32
    %c0_i32_1 = arith.constant 0 : i32
    return %c0_i32, %c0_i32_0 : i32, i32
  }
  func.func @transform_4(%arg0: i32, %arg1: i32) -> (i32, i32) {
    %c0_i32 = arith.constant 0 : i32
    %c0_i32_0 = arith.constant 0 : i32
    %c0_i32_1 = arith.constant 0 : i32
    return %c0_i32, %c0_i32_0 : i32, i32
  }
  func.func @transform_5(%arg0: i32, %arg1: i32) -> (i32, i32) {
    %c0_i32 = arith.constant 0 : i32
    %c0_i32_0 = arith.constant 0 : i32
    %c0_i32_1 = arith.constant 0 : i32
    return %c0_i32, %c0_i32_0 : i32, i32
  }
  func.func @transform_6(%arg0: i32, %arg1: i32) -> (i32, i32) {
    %c0_i32 = arith.constant 0 : i32
    %c0_i32_0 = arith.constant 0 : i32
    %c0_i32_1 = arith.constant 0 : i32
    return %c0_i32, %c0_i32_0 : i32, i32
  }
  func.func @transform_7(%arg0: i32, %arg1: i32) -> (i32, i32) {
    %c0_i32 = arith.constant 0 : i32
    %c0_i32_0 = arith.constant 0 : i32
    %c0_i32_1 = arith.constant 0 : i32
    return %c0_i32, %c0_i32_0 : i32, i32
  }
  func.func @transform_8(%arg0: i32, %arg1: i32) -> (i32, i32, i32) {
    %0 = arith.muli %arg0, %arg1 : i32
    %c0_i32 = arith.constant 0 : i32
    %c0_i32_0 = arith.constant 0 : i32
    %c0_i32_1 = arith.constant 0 : i32
    return %0, %c0_i32, %c0_i32_0 : i32, i32, i32
  }
}

</mosaic_0001>

<llo_original>
// kernel: spatial_att_forward.1
$region0: #{spatial_att_forward.1}
  #allocation0 [shape = 'u32[]', space=smem, size = 0x4, offset = 0x4, fixed_abs, tag = 'smem constant byte address 0x4 - core index']
  #allocation1 [shape = 'u32[72,128]{1,0:T(1,128)}', space=vmem, size = 0x9000, scoped, tag = 'internal scratch']
  #allocation2 [shape = 'f32[64,1]{1,0:T(8,128)}', space=vmem, size = 0x8000, scoped, tag = 'scratch operand']
  #allocation3 [shape = 'f32[64,1]{1,0:T(8,128)}', space=vmem, size = 0x8000, scoped, tag = 'scratch operand']
  #allocation4 [shape = 'f32[64,1]{1,0:T(8,128)}', space=vmem, size = 0x8000, scoped, tag = 'scratch operand']
  #allocation5 [shape = 'f32[64,1]{1,0:T(8,128)}', space=vmem, size = 0x8000, scoped, tag = 'scratch operand']
  #allocation6 [shape = 'f32[1,1]{1,0:T(1,128)S(6)}', space=smem, size = 0x200, scoped, tag = 'scoped memory for spatial_att_forward.1']
  %s0 = inlined_call_operand.vmem [shape: bf16[2,64,64], index: 0, kind: input, shape index: {}]
  %s1 = inlined_call_operand.vmem [shape: f32[2,64,256], index: 1, kind: input, shape index: {}]
  %s2 = inlined_call_operand.vmem [shape: bf16[16,64], index: 2, kind: input, shape index: {}]
  %s3 = inlined_call_operand.vmem [shape: f32[64,256], index: 3, kind: input, shape index: {}]
  %s4 = inlined_call_operand.vmem [shape: f32[16,256], index: 4, kind: input, shape index: {}]
  %s5 = inlined_call_operand.vmem [shape: f32[64,1], index: 5, kind: input, shape index: {}]
  %s6 = inlined_call_operand.vmem [shape: f32[64,1], index: 6, kind: input, shape index: {}]
  %s7 = inlined_call_operand.<no memory space> [shape: f32[1,1], index: 7, kind: input, shape index: {}]
  %s8 = inlined_call_operand.vmem [shape: f32[2,64,256], index: 8, kind: output, shape index: {}]
  %s9 = sld [smem:[#allocation0]]
  $region81: #{spatial_att_forward.1} parent=0
    _
  %s11 = ssub.s32 1, %s9
  %s12 = scalar_select 0, %s11, %s9
  %13 = sst [smem:[#allocation6]] %s7
  loop: start=0, step=1, limit=4
  $region2: #{spatial_att_forward.1} parent=0 // loop_pre_header
    _
  $region3: #{spatial_att_forward.1} parent=0 // loop_header
    %s15 = sphi 0, %s19
    %p16 = scmp.ge.s32.totalorder %s15, 4
    %s22 = sphi 0, %s34
    %s23 = sphi 0, %s30
    %s24 = sphi 0, %s22
    %s25 = sphi 0, %s23
    %s26 = sphi 0, %s24
    %s27 = sphi 0, %s25
    %s39 = sphi 0, %s41
    %s42 = sphi 0, %s39
    %s43 = sphi 0, %s42
    %s59 = sphi 0, %s43
    %s65 = sphi 0, %s67
    %s68 = sphi 0, %s65
    %s69 = sphi 0, %s68
    %s85 = sphi 0, %s69
    %s89 = sphi 0, %s89
    %s91 = sphi 0, %s89
    %s92 = sphi 0, %s91
    %s106 = sphi 0, %s92
    %s110 = sphi 0, %s110
    %s112 = sphi 0, %s110
    %s113 = sphi 0, %s112
    %s127 = sphi 0, %s113
    %s131 = sphi 0, %s131
    %s133 = sphi 0, %s131
    %s134 = sphi 0, %s133
    %s148 = sphi 0, %s134
    %s152 = sphi 0, %s152
    %s154 = sphi 0, %s152
    %s155 = sphi 0, %s154
    %s169 = sphi 0, %s155
    %s173 = sphi 0, %s173
    %s175 = sphi 0, %s173
    %s176 = sphi 0, %s175
    %s190 = sphi 0, %s176
    %s194 = sphi 0, %s194
    %s196 = sphi 0, %s194
    %s197 = sphi 0, %s196
    %s211 = sphi 0, %s197
    %s219 = sphi 0, %s221
    %s222 = sphi 0, %s219
    %s223 = sphi 0, %s222
    %s239 = sphi 0, %s223
  $region4: #{spatial_att_forward.1} parent=0 // loop_header_branch
    %18 = sbr.rel (%p16) target = $region8
  $region5: #{spatial_att_forward.1} parent=0 // loop_body
    %s20 = ssub.s32 %s15, 1
    %s21 = ssub.s32 %s15, 2
    %s28 = sadd.s32 1, %s23
    %p29 = scmp.ge.s32.totalorder %s28, 1
    %s30 = scalar_select %p29, 0, %s28
    %s31 = sadd.s32 1, %s22
    %s32 = scalar_select %p29, %s31, %s22
    %p33 = scmp.ge.s32.totalorder %s32, 2
    %s34 = scalar_select %p33, 0, %s32
    %s35 = smul.u32 %s22, %s23
    %s36 = smul.u32 %s34, %s30
    %s37 = ssub.s32 %s35, %s36
    %p38 = scmp.eq.s32.totalorder %s37, 0
    %s40 = sadd.s32 %s39, 1
    %s41 = scalar_select %p38, %s39, %s40
    %p44 = pneg %p38
    %p45 = scmp.eq.s32.totalorder %s15, 1
    %p46 = por %p44, %p45
    %p47 = scmp.ne.s32.totalorder %s39, %s42
    %p48 = scmp.eq.s32.totalorder %s15, 0
    %p49 = por %p47, %p48
    %p50 = scmp.ne.s32.totalorder %s39, %s42
    %p51 = scmp.eq.s32.totalorder %s20, 1
    %p52 = por %p50, %p51
    %p53 = scmp.ne.s32.totalorder %s42, %s43
    %p54 = scmp.eq.s32.totalorder %s20, 0
    %p55 = por %p53, %p54
    %p56 = scmp.ne.s32.totalorder %s42, %s43
    %p57 = scmp.eq.s32.totalorder %s21, 1
    %p58 = por %p56, %p57
    %p60 = scmp.ne.s32.totalorder %s43, %s59
    %p61 = scmp.eq.s32.totalorder %s21, 0
    %p62 = por %p60, %p61
    %s63 = ssub.s32 %s23, %s30
    %p64 = scmp.eq.s32.totalorder %s63, 0
    %s66 = sadd.s32 %s65, 1
    %s67 = scalar_select %p64, %s65, %s66
    %p70 = pneg %p64
    %p71 = scmp.eq.s32.totalorder %s15, 1
    %p72 = por %p70, %p71
    %p73 = scmp.ne.s32.totalorder %s65, %s68
    %p74 = scmp.eq.s32.totalorder %s15, 0
    %p75 = por %p73, %p74
    %p76 = scmp.ne.s32.totalorder %s65, %s68
    %p77 = scmp.eq.s32.totalorder %s20, 1
    %p78 = por %p76, %p77
    %p79 = scmp.ne.s32.totalorder %s68, %s69
    %p80 = scmp.eq.s32.totalorder %s20, 0
    %p81 = por %p79, %p80
    %p82 = scmp.ne.s32.totalorder %s68, %s69
    %p83 = scmp.eq.s32.totalorder %s21, 1
    %p84 = por %p82, %p83
    %p86 = scmp.ne.s32.totalorder %s69, %s85
    %p87 = scmp.eq.s32.totalorder %s21, 0
    %p88 = por %p86, %p87
    %s90 = sadd.s32 %s89, 1
    %p93 = scmp.eq.s32.totalorder %s15, 1
    %p94 = scmp.ne.s32.totalorder %s89, %s91
    %p95 = scmp.eq.s32.totalorder %s15, 0
    %p96 = por %p94, %p95
    %p97 = scmp.ne.s32.totalorder %s89, %s91
    %p98 = scmp.eq.s32.totalorder %s20, 1
    %p99 = por %p97, %p98
    %p100 = scmp.ne.s32.totalorder %s91, %s92
    %p101 = scmp.eq.s32.totalorder %s20, 0
    %p102 = por %p100, %p101
    %p103 = scmp.ne.s32.totalorder %s91, %s92
    %p104 = scmp.eq.s32.totalorder %s21, 1
    %p105 = por %p103, %p104
    %p107 = scmp.ne.s32.totalorder %s92, %s106
    %p108 = scmp.eq.s32.totalorder %s21, 0
    %p109 = por %p107, %p108
    %s111 = sadd.s32 %s110, 1
    %p114 = scmp.eq.s32.totalorder %s15, 1
    %p115 = scmp.ne.s32.totalorder %s110, %s112
    %p116 = scmp.eq.s32.totalorder %s15, 0
    %p117 = por %p115, %p116
    %p118 = scmp.ne.s32.totalorder %s110, %s112
    %p119 = scmp.eq.s32.totalorder %s20, 1
    %p120 = por %p118, %p119
    %p121 = scmp.ne.s32.totalorder %s112, %s113
    %p122 = scmp.eq.s32.totalorder %s20, 0
    %p123 = por %p121, %p122
    %p124 = scmp.ne.s32.totalorder %s112, %s113
    %p125 = scmp.eq.s32.totalorder %s21, 1
    %p126 = por %p124, %p125
    %p128 = scmp.ne.s32.totalorder %s113, %s127
    %p129 = scmp.eq.s32.totalorder %s21, 0
    %p130 = por %p128, %p129
    %s132 = sadd.s32 %s131, 1
    %p135 = scmp.eq.s32.totalorder %s15, 1
    %p136 = scmp.ne.s32.totalorder %s131, %s133
    %p137 = scmp.eq.s32.totalorder %s15, 0
    %p138 = por %p136, %p137
    %p139 = scmp.ne.s32.totalorder %s131, %s133
    %p140 = scmp.eq.s32.totalorder %s20, 1
    %p141 = por %p139, %p140
    %p142 = scmp.ne.s32.totalorder %s133, %s134
    %p143 = scmp.eq.s32.totalorder %s20, 0
    %p144 = por %p142, %p143
    %p145 = scmp.ne.s32.totalorder %s133, %s134
    %p146 = scmp.eq.s32.totalorder %s21, 1
    %p147 = por %p145, %p146
    %p149 = scmp.ne.s32.totalorder %s134, %s148
    %p150 = scmp.eq.s32.totalorder %s21, 0
    %p151 = por %p149, %p150
    %s153 = sadd.s32 %s152, 1
    %p156 = scmp.eq.s32.totalorder %s15, 1
    %p157 = scmp.ne.s32.totalorder %s152, %s154
    %p158 = scmp.eq.s32.totalorder %s15, 0
    %p159 = por %p157, %p158
    %p160 = scmp.ne.s32.totalorder %s152, %s154
    %p161 = scmp.eq.s32.totalorder %s20, 1
    %p162 = por %p160, %p161
    %p163 = scmp.ne.s32.totalorder %s154, %s155
    %p164 = scmp.eq.s32.totalorder %s20, 0
    %p165 = por %p163, %p164
    %p166 = scmp.ne.s32.totalorder %s154, %s155
    %p167 = scmp.eq.s32.totalorder %s21, 1
    %p168 = por %p166, %p167
    %p170 = scmp.ne.s32.totalorder %s155, %s169
    %p171 = scmp.eq.s32.totalorder %s21, 0
    %p172 = por %p170, %p171
    %s174 = sadd.s32 %s173, 1
    %p177 = scmp.eq.s32.totalorder %s15, 1
    %p178 = scmp.ne.s32.totalorder %s173, %s175
    %p179 = scmp.eq.s32.totalorder %s15, 0
    %p180 = por %p178, %p179
    %p181 = scmp.ne.s32.totalorder %s173, %s175
    %p182 = scmp.eq.s32.totalorder %s20, 1
    %p183 = por %p181, %p182
    %p184 = scmp.ne.s32.totalorder %s175, %s176
    %p185 = scmp.eq.s32.totalorder %s20, 0
    %p186 = por %p184, %p185
    %p187 = scmp.ne.s32.totalorder %s175, %s176
    %p188 = scmp.eq.s32.totalorder %s21, 1
    %p189 = por %p187, %p188
    %p191 = scmp.ne.s32.totalorder %s176, %s190
    %p192 = scmp.eq.s32.totalorder %s21, 0
    %p193 = por %p191, %p192
    %s195 = sadd.s32 %s194, 1
    %p198 = scmp.eq.s32.totalorder %s15, 1
    %p199 = scmp.ne.s32.totalorder %s194, %s196
    %p200 = scmp.eq.s32.totalorder %s15, 0
    %p201 = por %p199, %p200
    %p202 = scmp.ne.s32.totalorder %s194, %s196
    %p203 = scmp.eq.s32.totalorder %s20, 1
    %p204 = por %p202, %p203
    %p205 = scmp.ne.s32.totalorder %s196, %s197
    %p206 = scmp.eq.s32.totalorder %s20, 0
    %p207 = por %p205, %p206
    %p208 = scmp.ne.s32.totalorder %s196, %s197
    %p209 = scmp.eq.s32.totalorder %s21, 1
    %p210 = por %p208, %p209
    %p212 = scmp.ne.s32.totalorder %s197, %s211
    %p213 = scmp.eq.s32.totalorder %s21, 0
    %p214 = por %p212, %p213
    %s215 = smul.u32 %s22, %s23
    %s216 = smul.u32 %s34, %s30
    %s217 = ssub.s32 %s215, %s216
    %p218 = scmp.eq.s32.totalorder %s217, 0
    %s220 = sadd.s32 %s219, 1
    %s221 = scalar_select %p218, %s219, %s220
    %p224 = pneg %p218
    %p225 = scmp.eq.s32.totalorder %s15, 1
    %p226 = por %p224, %p225
    %p227 = scmp.ne.s32.totalorder %s219, %s222
    %p228 = scmp.eq.s32.totalorder %s15, 0
    %p229 = por %p227, %p228
    %p230 = scmp.ne.s32.totalorder %s219, %s222
    %p231 = scmp.eq.s32.totalorder %s20, 1
    %p232 = por %p230, %p231
    %p233 = scmp.ne.s32.totalorder %s222, %s223
    %p234 = scmp.eq.s32.totalorder %s20, 0
    %p235 = por %p233, %p234
    %p236 = scmp.ne.s32.totalorder %s222, %s223
    %p237 = scmp.eq.s32.totalorder %s21, 1
    %p238 = por %p236, %p237
    %p240 = scmp.ne.s32.totalorder %s223, %s239
    %p241 = scmp.eq.s32.totalorder %s21, 0
    %p242 = por %p240, %p241
    %p243 = scmp.le.s32.totalorder 1, %s15
    %p244 = scmp.lt.s32.totalorder %s15, 3
    %p245 = pnand %p243, %p244
    %p246 = pneg %p245
    // Predicated region
    $region9: #{spatial_att_forward.1} parent=5 // pred_check
      _
    $region10: #{spatial_att_forward.1} parent=5 // pred_check_branch
      %248 = sbr.rel (%p245) target = $region12
    $region11: #{spatial_att_forward.1} parent=5 // pred_region
      %s249 = ssub.s32 %s15, 1
      // Predicated region
      $region13: #{spatial_att_forward.1} parent=11 // pred_check
        %p250 = pneg %p81
      $region14: #{spatial_att_forward.1} parent=11 // pred_check_branch
        %252 = sbr.rel (%p250) target = $region16
      $region15: #{spatial_att_forward.1} parent=11 // pred_region
        %s253 = smul.u32 2, %s25
        %p254 = scmp.lt.s32.totalorder %s253, 1
        %s255 = scalar_select %p254, %s253, 1
        %s256 = smul.addr %s255, 16
        %s257 = smul.addr %s256, 8
        %s258 = scalar_lea.vmem %s1, %s257
        %s259 = smul.u32 2, %s25
      $region16: #{spatial_att_forward.1} parent=11 // pred_fallthru
        _
      // Predicated region
      $region17: #{spatial_att_forward.1} parent=11 // pred_check
        %p260 = pneg %p102
      $region18: #{spatial_att_forward.1} parent=11 // pred_check_branch
        %262 = sbr.rel (%p260) target = $region20
      $region19: #{spatial_att_forward.1} parent=11 // pred_region
        _
      $region20: #{spatial_att_forward.1} parent=11 // pred_fallthru
        _
      // Predicated region
      $region21: #{spatial_att_forward.1} parent=11 // pred_check
        %p263 = pneg %p123
      $region22: #{spatial_att_forward.1} parent=11 // pred_check_branch
        %265 = sbr.rel (%p263) target = $region24
      $region23: #{spatial_att_forward.1} parent=11 // pred_region
        _
      $region24: #{spatial_att_forward.1} parent=11 // pred_fallthru
        _
      // Predicated region
      $region25: #{spatial_att_forward.1} parent=11 // pred_check
        %p266 = pneg %p144
      $region26: #{spatial_att_forward.1} parent=11 // pred_check_branch
        %268 = sbr.rel (%p266) target = $region28
      $region27: #{spatial_att_forward.1} parent=11 // pred_region
        _
      $region28: #{spatial_att_forward.1} parent=11 // pred_fallthru
        _
      // Predicated region
      $region29: #{spatial_att_forward.1} parent=11 // pred_check
        %p269 = pneg %p165
      $region30: #{spatial_att_forward.1} parent=11 // pred_check_branch
        %271 = sbr.rel (%p269) target = $region32
      $region31: #{spatial_att_forward.1} parent=11 // pred_region
        _
      $region32: #{spatial_att_forward.1} parent=11 // pred_fallthru
        _
      // Predicated region
      $region33: #{spatial_att_forward.1} parent=11 // pred_check
        %p272 = pneg %p186
      $region34: #{spatial_att_forward.1} parent=11 // pred_check_branch
        %274 = sbr.rel (%p272) target = $region36
      $region35: #{spatial_att_forward.1} parent=11 // pred_region
        _
      $region36: #{spatial_att_forward.1} parent=11 // pred_fallthru
        _
      // Predicated region
      $region37: #{spatial_att_forward.1} parent=11 // pred_check
        %p275 = pneg %p207
      $region38: #{spatial_att_forward.1} parent=11 // pred_check_branch
        %277 = sbr.rel (%p275) target = $region40
      $region39: #{spatial_att_forward.1} parent=11 // pred_region
        _
      $region40: #{spatial_att_forward.1} parent=11 // pred_fallthru
        _
    $region12: #{spatial_att_forward.1} parent=5 // pred_fallthru
      _
    %p278 = scmp.lt.s32.totalorder %s15, 2
    // Predicated region
    $region41: #{spatial_att_forward.1} parent=5 // pred_check
      %p279 = pneg %p278
    $region42: #{spatial_att_forward.1} parent=5 // pred_check_branch
      %281 = sbr.rel (%p279) target = $region44
    $region43: #{spatial_att_forward.1} parent=5 // pred_region
      // Predicated region
      $region45: #{spatial_att_forward.1} parent=43 // pred_check
        %p282 = pneg %p49
      $region46: #{spatial_att_forward.1} parent=43 // pred_check_branch
        %284 = sbr.rel (%p282) target = $region48
      $region47: #{spatial_att_forward.1} parent=43 // pred_region
        %s285 = smul.u32 %s22, %s23
        %s286 = smul.u32 2, %s285
        %p287 = scmp.lt.s32.totalorder %s286, 1
        %s288 = scalar_select %p287, %s286, 1
        %s289 = smul.addr %s288, 8
        %s290 = smul.addr %s289, 4
        %s291 = scalar_lea.vmem %s0, %s290
        %s292 = smul.u32 %s22, %s23
        %s293 = smul.u32 2, %s292
      $region48: #{spatial_att_forward.1} parent=43 // pred_fallthru
        _
    $region44: #{spatial_att_forward.1} parent=5 // pred_fallthru
      _
    %p294 = scmp.le.s32.totalorder 1, %s15
    %p295 = scmp.lt.s32.totalorder %s15, 3
    %p296 = pnand %p294, %p295
    %p297 = pneg %p296
    // Predicated region
    $region49: #{spatial_att_forward.1} parent=5 // pred_check
      _
    $region50: #{spatial_att_forward.1} parent=5 // pred_check_branch
      %299 = sbr.rel (%p296) target = $region52
    $region51: #{spatial_att_forward.1} parent=5 // pred_region
      %s300 = ssub.s32 %s15, 1
      %s301 = smul.u32 %s24, %s25
      %s302 = smul.u32 2, %s301
      %p303 = scmp.lt.s32.totalorder %s302, 1
      %s304 = scalar_select %p303, %s302, 1
      %s305 = smul.addr %s304, 8
      %s306 = smul.addr %s305, 4
      %s307 = scalar_lea.vmem %s0, %s306
      %p308 = pneg %p55
      %p309 = pneg %p52
      %s310 = smul.u32 2, %s25
      %p311 = scmp.lt.s32.totalorder %s310, 1
      %s312 = scalar_select %p311, %s310, 1
      %s313 = smul.addr %s312, 16
      %s314 = smul.addr %s313, 8
      %s315 = scalar_lea.vmem %s1, %s314
      %p316 = pneg %p81
      %p317 = pneg %p78
      %p318 = pneg %p102
      %p319 = pneg %p99
      %p320 = pneg %p123
      %p321 = pneg %p120
      %p322 = pneg %p144
      %p323 = pneg %p141
      %p324 = pneg %p165
      %p325 = pneg %p162
      %p326 = pneg %p186
      %p327 = pneg %p183
      %p328 = pneg %p207
      %p329 = pneg %p204
      %p330 = pneg %p235
      %p331 = pneg %p232
      %s332 = smul.u32 %s24, %s25
      %s333 = smul.u32 2, %s332
      %p334 = scmp.lt.s32.totalorder %s333, 1
      %s335 = scalar_select %p334, %s333, 1
      %s336 = smul.addr %s335, 16
      %s337 = smul.addr %s336, 8
      %s338 = scalar_lea.vmem %s8, %s337
      %s339 = smul.u32 %s24, %s25
      %s340 = smul.u32 2, %s339
      %p341 = scmp.lt.s32.totalorder %s340, 1
      %s342 = scalar_select %p341, %s340, 1
      %s343 = smul.addr %s342, 8
      %s344 = smul.addr %s343, 4
      %s345 = scalar_lea.vmem %s0, %s344
      %s346 = smul.u32 %s24, %s25
      %s347 = smul.u32 2, %s346
      %s348 = smul.u32 2, %s25
      %p349 = scmp.lt.s32.totalorder %s348, 1
      %s350 = scalar_select %p349, %s348, 1
      %s351 = smul.addr %s350, 16
      %s352 = smul.addr %s351, 8
      %s353 = scalar_lea.vmem %s1, %s352
      %s354 = smul.u32 2, %s25
      %s355 = smul.u32 %s24, %s25
      %s356 = smul.u32 2, %s355
      %p357 = scmp.lt.s32.totalorder %s356, 1
      %s358 = scalar_select %p357, %s356, 1
      %s359 = smul.addr %s358, 16
      %s360 = smul.addr %s359, 8
      %s361 = scalar_lea.vmem %s8, %s360
      %s362 = smul.u32 %s24, %s25
      %s363 = smul.u32 2, %s362
      %p365 = scmp.eq.s32.totalorder %s24, 0
      // Predicated region
      $region53: #{spatial_att_forward.1} parent=51 // pred_check
        %p366 = pneg %p365
      $region54: #{spatial_att_forward.1} parent=51 // pred_check_branch
        %368 = sbr.rel (%p366) target = $region56
      $region55: #{spatial_att_forward.1} parent=51 // pred_region
        %p369 = scmp.eq.s32.totalorder %s25, 0
        // Predicated region
        $region57: #{spatial_att_forward.1} parent=55 // pred_check
          %p370 = pneg %p369
        $region58: #{spatial_att_forward.1} parent=55 // pred_check_branch
          %372 = sbr.rel (%p370) target = $region60
        $region59: #{spatial_att_forward.1} parent=55 // pred_region
          %vm373 = vcmask 7168
          %374 = vst.msk [vmem:[#allocation2] sm:$0xff] %vm373, 0.0
          %375 = vst.msk [vmem:[#allocation2 + $0x8] sm:$0xff] %vm373, 0.0
          %376 = vst.msk [vmem:[#allocation2 + $0x10] sm:$0xff] %vm373, 0.0
          %377 = vst.msk [vmem:[#allocation2 + $0x18] sm:$0xff] %vm373, 0.0
          %378 = vst.msk [vmem:[#allocation2 + $0x20] sm:$0xff] %vm373, 0.0
          %379 = vst.msk [vmem:[#allocation2 + $0x28] sm:$0xff] %vm373, 0.0
          %380 = vst.msk [vmem:[#allocation2 + $0x30] sm:$0xff] %vm373, 0.0
          %381 = vst.msk [vmem:[#allocation2 + $0x38] sm:$0xff] %vm373, 0.0
          %382 = vst.msk [vmem:[#allocation3] sm:$0xff] %vm373, 0.0
          %383 = vst.msk [vmem:[#allocation3 + $0x8] sm:$0xff] %vm373, 0.0
          %384 = vst.msk [vmem:[#allocation3 + $0x10] sm:$0xff] %vm373, 0.0
          %385 = vst.msk [vmem:[#allocation3 + $0x18] sm:$0xff] %vm373, 0.0
          %386 = vst.msk [vmem:[#allocation3 + $0x20] sm:$0xff] %vm373, 0.0
          %387 = vst.msk [vmem:[#allocation3 + $0x28] sm:$0xff] %vm373, 0.0
          %388 = vst.msk [vmem:[#allocation3 + $0x30] sm:$0xff] %vm373, 0.0
          %389 = vst.msk [vmem:[#allocation3 + $0x38] sm:$0xff] %vm373, 0.0
        $region60: #{spatial_att_forward.1} parent=55 // pred_fallthru
          _
        %v390 = vld [vmem:[%s353] sm:$0xff]
        %v391 = vld [vmem:[%s353 + $0x8] sm:$0xff]
        %v392 = vld [vmem:[%s353 + $0x10] sm:$0xff]
        %v393 = vld [vmem:[%s353 + $0x18] sm:$0xff]
        %v394 = vld [vmem:[%s353 + $0x20] sm:$0xff]
        %v395 = vld [vmem:[%s353 + $0x28] sm:$0xff]
        %v396 = vld [vmem:[%s353 + $0x30] sm:$0xff]
        %v397 = vld [vmem:[%s353 + $0x38] sm:$0xff]
        %v398 = vld [vmem:[%s353 + $0x40] sm:$0xff]
        %v399 = vld [vmem:[%s353 + $0x48] sm:$0xff]
        %v400 = vld [vmem:[%s353 + $0x50] sm:$0xff]
        %v401 = vld [vmem:[%s353 + $0x58] sm:$0xff]
        %v402 = vld [vmem:[%s353 + $0x60] sm:$0xff]
        %v403 = vld [vmem:[%s353 + $0x68] sm:$0xff]
        %v404 = vld [vmem:[%s353 + $0x70] sm:$0xff]
        %v405 = vld [vmem:[%s353 + $0x78] sm:$0xff]
        %v406 = vld [vmem:[#allocation2] sm:$0xff]
        %v407 = vld [vmem:[#allocation2 + $0x8] sm:$0xff]
        %v408 = vld [vmem:[#allocation2 + $0x10] sm:$0xff]
        %v409 = vld [vmem:[#allocation2 + $0x18] sm:$0xff]
        %v410 = vld [vmem:[#allocation2 + $0x20] sm:$0xff]
        %v411 = vld [vmem:[#allocation2 + $0x28] sm:$0xff]
        %v412 = vld [vmem:[#allocation2 + $0x30] sm:$0xff]
        %v413 = vld [vmem:[#allocation2 + $0x38] sm:$0xff]
        %v414 = vadd.f32 %v390, %v391
        %415 = vadd.xlane.f32.xlu0 %v414
        %v416 = vpop.xlane.xlu0 %415
        %v417 = vadd.f32 %v392, %v393
        %418 = vadd.xlane.f32.xlu0 %v417
        %v419 = vpop.xlane.xlu0 %418
        %v420 = vadd.f32 %v394, %v395
        %421 = vadd.xlane.f32.xlu0 %v420
        %v422 = vpop.xlane.xlu0 %421
        %v423 = vadd.f32 %v396, %v397
        %424 = vadd.xlane.f32.xlu0 %v423
        %v425 = vpop.xlane.xlu0 %424
        %v426 = vadd.f32 %v398, %v399
        %427 = vadd.xlane.f32.xlu0 %v426
        %v428 = vpop.xlane.xlu0 %427
        %v429 = vadd.f32 %v400, %v401
        %430 = vadd.xlane.f32.xlu0 %v429
        %v431 = vpop.xlane.xlu0 %430
        %v432 = vadd.f32 %v402, %v403
        %433 = vadd.xlane.f32.xlu0 %v432
        %v434 = vpop.xlane.xlu0 %433
        %v435 = vadd.f32 %v404, %v405
        %436 = vadd.xlane.f32.xlu0 %v435
        %v437 = vpop.xlane.xlu0 %436
        %v438 = vadd.f32 %v406, %v416
        %v439 = vadd.f32 %v407, %v419
        %v440 = vadd.f32 %v408, %v422
        %v441 = vadd.f32 %v409, %v425
        %v442 = vadd.f32 %v410, %v428
        %v443 = vadd.f32 %v411, %v431
        %v444 = vadd.f32 %v412, %v434
        %v445 = vadd.f32 %v413, %v437
        %vm446 = vcmask 7168
        %447 = vst.msk [vmem:[#allocation2] sm:$0xff] %vm446, %v438
        %448 = vst.msk [vmem:[#allocation2 + $0x8] sm:$0xff] %vm446, %v439
        %449 = vst.msk [vmem:[#allocation2 + $0x10] sm:$0xff] %vm446, %v440
        %450 = vst.msk [vmem:[#allocation2 + $0x18] sm:$0xff] %vm446, %v441
        %451 = vst.msk [vmem:[#allocation2 + $0x20] sm:$0xff] %vm446, %v442
        %452 = vst.msk [vmem:[#allocation2 + $0x28] sm:$0xff] %vm446, %v443
        %453 = vst.msk [vmem:[#allocation2 + $0x30] sm:$0xff] %vm446, %v444
        %454 = vst.msk [vmem:[#allocation2 + $0x38] sm:$0xff] %vm446, %v445
        %v455 = vld [vmem:[#allocation3] sm:$0xff]
        %v456 = vld [vmem:[#allocation3 + $0x8] sm:$0xff]
        %v457 = vld [vmem:[#allocation3 + $0x10] sm:$0xff]
        %v458 = vld [vmem:[#allocation3 + $0x18] sm:$0xff]
        %v459 = vld [vmem:[#allocation3 + $0x20] sm:$0xff]
        %v460 = vld [vmem:[#allocation3 + $0x28] sm:$0xff]
        %v461 = vld [vmem:[#allocation3 + $0x30] sm:$0xff]
        %v462 = vld [vmem:[#allocation3 + $0x38] sm:$0xff]
        %v463 = vmul.f32 %v390, %v390
        %v464 = vmul.f32 %v391, %v391
        %v465 = vmul.f32 %v392, %v392
        %v466 = vmul.f32 %v393, %v393
        %v467 = vmul.f32 %v394, %v394
        %v468 = vmul.f32 %v395, %v395
        %v469 = vmul.f32 %v396, %v396
        %v470 = vmul.f32 %v397, %v397
        %v471 = vmul.f32 %v398, %v398
        %v472 = vmul.f32 %v399, %v399
        %v473 = vmul.f32 %v400, %v400
        %v474 = vmul.f32 %v401, %v401
        %v475 = vmul.f32 %v402, %v402
        %v476 = vmul.f32 %v403, %v403
        %v477 = vmul.f32 %v404, %v404
        %v478 = vmul.f32 %v405, %v405
        %v479 = vadd.f32 %v463, %v464
        %480 = vadd.xlane.f32.xlu0 %v479
        %v481 = vpop.xlane.xlu0 %480
        %v482 = vadd.f32 %v465, %v466
        %483 = vadd.xlane.f32.xlu0 %v482
        %v484 = vpop.xlane.xlu0 %483
        %v485 = vadd.f32 %v467, %v468
        %486 = vadd.xlane.f32.xlu0 %v485
        %v487 = vpop.xlane.xlu0 %486
        %v488 = vadd.f32 %v469, %v470
        %489 = vadd.xlane.f32.xlu0 %v488
        %v490 = vpop.xlane.xlu0 %489
        %v491 = vadd.f32 %v471, %v472
        %492 = vadd.xlane.f32.xlu0 %v491
        %v493 = vpop.xlane.xlu0 %492
        %v494 = vadd.f32 %v473, %v474
        %495 = vadd.xlane.f32.xlu0 %v494
        %v496 = vpop.xlane.xlu0 %495
        %v497 = vadd.f32 %v475, %v476
        %498 = vadd.xlane.f32.xlu0 %v497
        %v499 = vpop.xlane.xlu0 %498
        %v500 = vadd.f32 %v477, %v478
        %501 = vadd.xlane.f32.xlu0 %v500
        %v502 = vpop.xlane.xlu0 %501
        %v503 = vadd.f32 %v455, %v481
        %v504 = vadd.f32 %v456, %v484
        %v505 = vadd.f32 %v457, %v487
        %v506 = vadd.f32 %v458, %v490
        %v507 = vadd.f32 %v459, %v493
        %v508 = vadd.f32 %v460, %v496
        %v509 = vadd.f32 %v461, %v499
        %v510 = vadd.f32 %v462, %v502
        %511 = vst.msk [vmem:[#allocation3] sm:$0xff] %vm446, %v503
        %512 = vst.msk [vmem:[#allocation3 + $0x8] sm:$0xff] %vm446, %v504
        %513 = vst.msk [vmem:[#allocation3 + $0x10] sm:$0xff] %vm446, %v505
        %514 = vst.msk [vmem:[#allocation3 + $0x18] sm:$0xff] %vm446, %v506
        %515 = vst.msk [vmem:[#allocation3 + $0x20] sm:$0xff] %vm446, %v507
        %516 = vst.msk [vmem:[#allocation3 + $0x28] sm:$0xff] %vm446, %v508
        %517 = vst.msk [vmem:[#allocation3 + $0x30] sm:$0xff] %vm446, %v509
        %518 = vst.msk [vmem:[#allocation3 + $0x38] sm:$0xff] %vm446, %v510
        %s519 = scalar_lea.vmem %s353, 128
        %v520 = vld [vmem:[%s519] sm:$0xff]
        %v521 = vld [vmem:[%s519 + $0x8] sm:$0xff]
        %v522 = vld [vmem:[%s519 + $0x10] sm:$0xff]
        %v523 = vld [vmem:[%s519 + $0x18] sm:$0xff]
        %v524 = vld [vmem:[%s519 + $0x20] sm:$0xff]
        %v525 = vld [vmem:[%s519 + $0x28] sm:$0xff]
        %v526 = vld [vmem:[%s519 + $0x30] sm:$0xff]
        %v527 = vld [vmem:[%s519 + $0x38] sm:$0xff]
        %v528 = vld [vmem:[%s519 + $0x40] sm:$0xff]
        %v529 = vld [vmem:[%s519 + $0x48] sm:$0xff]
        %v530 = vld [vmem:[%s519 + $0x50] sm:$0xff]
        %v531 = vld [vmem:[%s519 + $0x58] sm:$0xff]
        %v532 = vld [vmem:[%s519 + $0x60] sm:$0xff]
        %v533 = vld [vmem:[%s519 + $0x68] sm:$0xff]
        %v534 = vld [vmem:[%s519 + $0x70] sm:$0xff]
        %v535 = vld [vmem:[%s519 + $0x78] sm:$0xff]
        %v536 = vld [vmem:[#allocation2] sm:$0xff]
        %v537 = vld [vmem:[#allocation2 + $0x8] sm:$0xff]
        %v538 = vld [vmem:[#allocation2 + $0x10] sm:$0xff]
        %v539 = vld [vmem:[#allocation2 + $0x18] sm:$0xff]
        %v540 = vld [vmem:[#allocation2 + $0x20] sm:$0xff]
        %v541 = vld [vmem:[#allocation2 + $0x28] sm:$0xff]
        %v542 = vld [vmem:[#allocation2 + $0x30] sm:$0xff]
        %v543 = vld [vmem:[#allocation2 + $0x38] sm:$0xff]
        %v544 = vadd.f32 %v520, %v521
        %545 = vadd.xlane.f32.xlu0 %v544
        %v546 = vpop.xlane.xlu0 %545
        %v547 = vadd.f32 %v522, %v523
        %548 = vadd.xlane.f32.xlu0 %v547
        %v549 = vpop.xlane.xlu0 %548
        %v550 = vadd.f32 %v524, %v525
        %551 = vadd.xlane.f32.xlu0 %v550
        %v552 = vpop.xlane.xlu0 %551
        %v553 = vadd.f32 %v526, %v527
        %554 = vadd.xlane.f32.xlu0 %v553
        %v555 = vpop.xlane.xlu0 %554
        %v556 = vadd.f32 %v528, %v529
        %557 = vadd.xlane.f32.xlu0 %v556
        %v558 = vpop.xlane.xlu0 %557
        %v559 = vadd.f32 %v530, %v531
        %560 = vadd.xlane.f32.xlu0 %v559
        %v561 = vpop.xlane.xlu0 %560
        %v562 = vadd.f32 %v532, %v533
        %563 = vadd.xlane.f32.xlu0 %v562
        %v564 = vpop.xlane.xlu0 %563
        %v565 = vadd.f32 %v534, %v535
        %566 = vadd.xlane.f32.xlu0 %v565
        %v567 = vpop.xlane.xlu0 %566
        %v568 = vadd.f32 %v536, %v546
        %v569 = vadd.f32 %v537, %v549
        %v570 = vadd.f32 %v538, %v552
        %v571 = vadd.f32 %v539, %v555
        %v572 = vadd.f32 %v540, %v558
        %v573 = vadd.f32 %v541, %v561
        %v574 = vadd.f32 %v542, %v564
        %v575 = vadd.f32 %v543, %v567
        %576 = vst.msk [vmem:[#allocation2] sm:$0xff] %vm446, %v568
        %577 = vst.msk [vmem:[#allocation2 + $0x8] sm:$0xff] %vm446, %v569
        %578 = vst.msk [vmem:[#allocation2 + $0x10] sm:$0xff] %vm446, %v570
        %579 = vst.msk [vmem:[#allocation2 + $0x18] sm:$0xff] %vm446, %v571
        %580 = vst.msk [vmem:[#allocation2 + $0x20] sm:$0xff] %vm446, %v572
        %581 = vst.msk [vmem:[#allocation2 + $0x28] sm:$0xff] %vm446, %v573
        %582 = vst.msk [vmem:[#allocation2 + $0x30] sm:$0xff] %vm446, %v574
        %583 = vst.msk [vmem:[#allocation2 + $0x38] sm:$0xff] %vm446, %v575
        %v584 = vld [vmem:[#allocation3] sm:$0xff]
        %v585 = vld [vmem:[#allocation3 + $0x8] sm:$0xff]
        %v586 = vld [vmem:[#allocation3 + $0x10] sm:$0xff]
        %v587 = vld [vmem:[#allocation3 + $0x18] sm:$0xff]
        %v588 = vld [vmem:[#allocation3 + $0x20] sm:$0xff]
        %v589 = vld [vmem:[#allocation3 + $0x28] sm:$0xff]
        %v590 = vld [vmem:[#allocation3 + $0x30] sm:$0xff]
        %v591 = vld [vmem:[#allocation3 + $0x38] sm:$0xff]
        %v592 = vmul.f32 %v520, %v520
        %v593 = vmul.f32 %v521, %v521
        %v594 = vmul.f32 %v522, %v522
        %v595 = vmul.f32 %v523, %v523
        %v596 = vmul.f32 %v524, %v524
        %v597 = vmul.f32 %v525, %v525
        %v598 = vmul.f32 %v526, %v526
        %v599 = vmul.f32 %v527, %v527
        %v600 = vmul.f32 %v528, %v528
        %v601 = vmul.f32 %v529, %v529
        %v602 = vmul.f32 %v530, %v530
        %v603 = vmul.f32 %v531, %v531
        %v604 = vmul.f32 %v532, %v532
        %v605 = vmul.f32 %v533, %v533
        %v606 = vmul.f32 %v534, %v534
        %v607 = vmul.f32 %v535, %v535
        %v608 = vadd.f32 %v592, %v593
        %609 = vadd.xlane.f32.xlu0 %v608
        %v610 = vpop.xlane.xlu0 %609
        %v611 = vadd.f32 %v594, %v595
        %612 = vadd.xlane.f32.xlu0 %v611
        %v613 = vpop.xlane.xlu0 %612
        %v614 = vadd.f32 %v596, %v597
        %615 = vadd.xlane.f32.xlu0 %v614
        %v616 = vpop.xlane.xlu0 %615
        %v617 = vadd.f32 %v598, %v599
        %618 = vadd.xlane.f32.xlu0 %v617
        %v619 = vpop.xlane.xlu0 %618
        %v620 = vadd.f32 %v600, %v601
        %621 = vadd.xlane.f32.xlu0 %v620
        %v622 = vpop.xlane.xlu0 %621
        %v623 = vadd.f32 %v602, %v603
        %624 = vadd.xlane.f32.xlu0 %v623
        %v625 = vpop.xlane.xlu0 %624
        %v626 = vadd.f32 %v604, %v605
        %627 = vadd.xlane.f32.xlu0 %v626
        %v628 = vpop.xlane.xlu0 %627
        %v629 = vadd.f32 %v606, %v607
        %630 = vadd.xlane.f32.xlu0 %v629
        %v631 = vpop.xlane.xlu0 %630
        %v632 = vadd.f32 %v584, %v610
        %v633 = vadd.f32 %v585, %v613
        %v634 = vadd.f32 %v586, %v616
        %v635 = vadd.f32 %v587, %v619
        %v636 = vadd.f32 %v588, %v622
        %v637 = vadd.f32 %v589, %v625
        %v638 = vadd.f32 %v590, %v628
        %v639 = vadd.f32 %v591, %v631
        %640 = vst.msk [vmem:[#allocation3] sm:$0xff] %vm446, %v632
        %641 = vst.msk [vmem:[#allocation3 + $0x8] sm:$0xff] %vm446, %v633
        %642 = vst.msk [vmem:[#allocation3 + $0x10] sm:$0xff] %vm446, %v634
        %643 = vst.msk [vmem:[#allocation3 + $0x18] sm:$0xff] %vm446, %v635
        %644 = vst.msk [vmem:[#allocation3 + $0x20] sm:$0xff] %vm446, %v636
        %645 = vst.msk [vmem:[#allocation3 + $0x28] sm:$0xff] %vm446, %v637
        %646 = vst.msk [vmem:[#allocation3 + $0x30] sm:$0xff] %vm446, %v638
        %647 = vst.msk [vmem:[#allocation3 + $0x38] sm:$0xff] %vm446, %v639
        // Predicated region
        $region61: #{spatial_att_forward.1} parent=55 // pred_check
          %p648 = pneg %p369
        $region62: #{spatial_att_forward.1} parent=55 // pred_check_branch
          %650 = sbr.rel (%p648) target = $region64
        $region63: #{spatial_att_forward.1} parent=55 // pred_region
          %v651 = vld [vmem:[#allocation2] sm:$0xff]
          %v652 = vld [vmem:[#allocation2 + $0x8] sm:$0xff]
          %v653 = vld [vmem:[#allocation2 + $0x10] sm:$0xff]
          %v654 = vld [vmem:[#allocation2 + $0x18] sm:$0xff]
          %v655 = vld [vmem:[#allocation2 + $0x20] sm:$0xff]
          %v656 = vld [vmem:[#allocation2 + $0x28] sm:$0xff]
          %v657 = vld [vmem:[#allocation2 + $0x30] sm:$0xff]
          %v658 = vld [vmem:[#allocation2 + $0x38] sm:$0xff]
          %v659 = vmul.f32 %v651, 0.001953125
          %v660 = vmul.f32 %v652, 0.001953125
          %v661 = vmul.f32 %v653, 0.001953125
          %v662 = vmul.f32 %v654, 0.001953125
          %v663 = vmul.f32 %v655, 0.001953125
          %v664 = vmul.f32 %v656, 0.001953125
          %v665 = vmul.f32 %v657, 0.001953125
          %v666 = vmul.f32 %v658, 0.001953125
          %v667 = vld [vmem:[#allocation3] sm:$0xff]
          %v668 = vld [vmem:[#allocation3 + $0x8] sm:$0xff]
          %v669 = vld [vmem:[#allocation3 + $0x10] sm:$0xff]
          %v670 = vld [vmem:[#allocation3 + $0x18] sm:$0xff]
          %v671 = vld [vmem:[#allocation3 + $0x20] sm:$0xff]
          %v672 = vld [vmem:[#allocation3 + $0x28] sm:$0xff]
          %v673 = vld [vmem:[#allocation3 + $0x30] sm:$0xff]
          %v674 = vld [vmem:[#allocation3 + $0x38] sm:$0xff]
          %v675 = vmul.f32 %v667, 0.001953125
          %v676 = vmul.f32 %v668, 0.001953125
          %v677 = vmul.f32 %v669, 0.001953125
          %v678 = vmul.f32 %v670, 0.001953125
          %v679 = vmul.f32 %v671, 0.001953125
          %v680 = vmul.f32 %v672, 0.001953125
          %v681 = vmul.f32 %v673, 0.001953125
          %v682 = vmul.f32 %v674, 0.001953125
          %v683 = vmul.f32 %v659, %v659
          %v684 = vmul.f32 %v660, %v660
          %v685 = vmul.f32 %v661, %v661
          %v686 = vmul.f32 %v662, %v662
          %v687 = vmul.f32 %v663, %v663
          %v688 = vmul.f32 %v664, %v664
          %v689 = vmul.f32 %v665, %v665
          %v690 = vmul.f32 %v666, %v666
          %v691 = vsub.f32 %v675, %v683
          %v692 = vsub.f32 %v676, %v684
          %v693 = vsub.f32 %v677, %v685
          %v694 = vsub.f32 %v678, %v686
          %v695 = vsub.f32 %v679, %v687
          %v696 = vsub.f32 %v680, %v688
          %v697 = vsub.f32 %v681, %v689
          %v698 = vsub.f32 %v682, %v690
          %v699 = vmax.f32 %v691, 0.0
          %v700 = vmax.f32 %v692, 0.0
          %v701 = vmax.f32 %v693, 0.0
          %v702 = vmax.f32 %v694, 0.0
          %v703 = vmax.f32 %v695, 0.0
          %v704 = vmax.f32 %v696, 0.0
          %v705 = vmax.f32 %v697, 0.0
          %v706 = vmax.f32 %v698, 0.0
          %v707 = vld [vmem:[%s5] sm:$0xff]
          %v708 = vld [vmem:[%s5 + $0x8] sm:$0xff]
          %v709 = vld [vmem:[%s5 + $0x10] sm:$0xff]
          %v710 = vld [vmem:[%s5 + $0x18] sm:$0xff]
          %v711 = vld [vmem:[%s5 + $0x20] sm:$0xff]
          %v712 = vld [vmem:[%s5 + $0x28] sm:$0xff]
          %v713 = vld [vmem:[%s5 + $0x30] sm:$0xff]
          %v714 = vld [vmem:[%s5 + $0x38] sm:$0xff]
          %v715 = vadd.f32 %v699, 1e-05
          %v716 = vadd.f32 %v700, 1e-05
          %v717 = vadd.f32 %v701, 1e-05
          %v718 = vadd.f32 %v702, 1e-05
          %v719 = vadd.f32 %v703, 1e-05
          %v720 = vadd.f32 %v704, 1e-05
          %v721 = vadd.f32 %v705, 1e-05
          %v722 = vadd.f32 %v706, 1e-05
          %v723 = vrsqrt.pop %v715
          %v724 = vmul.f32 %v723, %v715
          %v725 = vmul.f32 %v724, %v723
          %v726 = vmul.f32 0.5, %v725
          %v727 = vsub.f32 1.5, %v726
          %v728 = vmul.f32 %v723, %v727
          %vm729 = vweird.f32 %v715
          %vm730 = vweird.f32 %v723
          %vm731 = vmor %vm729, %vm730
          %v732 = vsel %vm731, %v723, %v728
          %v733 = vrsqrt.pop %v716
          %v734 = vmul.f32 %v733, %v716
          %v735 = vmul.f32 %v734, %v733
          %v736 = vmul.f32 0.5, %v735
          %v737 = vsub.f32 1.5, %v736
          %v738 = vmul.f32 %v733, %v737
          %vm739 = vweird.f32 %v716
          %vm740 = vweird.f32 %v733
          %vm741 = vmor %vm739, %vm740
          %v742 = vsel %vm741, %v733, %v738
          %v743 = vrsqrt.pop %v717
          %v744 = vmul.f32 %v743, %v717
          %v745 = vmul.f32 %v744, %v743
          %v746 = vmul.f32 0.5, %v745
          %v747 = vsub.f32 1.5, %v746
          %v748 = vmul.f32 %v743, %v747
          %vm749 = vweird.f32 %v717
          %vm750 = vweird.f32 %v743
          %vm751 = vmor %vm749, %vm750
          %v752 = vsel %vm751, %v743, %v748
          %v753 = vrsqrt.pop %v718
          %v754 = vmul.f32 %v753, %v718
          %v755 = vmul.f32 %v754, %v753
          %v756 = vmul.f32 0.5, %v755
          %v757 = vsub.f32 1.5, %v756
          %v758 = vmul.f32 %v753, %v757
          %vm759 = vweird.f32 %v718
          %vm760 = vweird.f32 %v753
          %vm761 = vmor %vm759, %vm760
          %v762 = vsel %vm761, %v753, %v758
          %v763 = vrsqrt.pop %v719
          %v764 = vmul.f32 %v763, %v719
          %v765 = vmul.f32 %v764, %v763
          %v766 = vmul.f32 0.5, %v765
          %v767 = vsub.f32 1.5, %v766
          %v768 = vmul.f32 %v763, %v767
          %vm769 = vweird.f32 %v719
          %vm770 = vweird.f32 %v763
          %vm771 = vmor %vm769, %vm770
          %v772 = vsel %vm771, %v763, %v768
          %v773 = vrsqrt.pop %v720
          %v774 = vmul.f32 %v773, %v720
          %v775 = vmul.f32 %v774, %v773
          %v776 = vmul.f32 0.5, %v775
          %v777 = vsub.f32 1.5, %v776
          %v778 = vmul.f32 %v773, %v777
          %vm779 = vweird.f32 %v720
          %vm780 = vweird.f32 %v773
          %vm781 = vmor %vm779, %vm780
          %v782 = vsel %vm781, %v773, %v778
          %v783 = vrsqrt.pop %v721
          %v784 = vmul.f32 %v783, %v721
          %v785 = vmul.f32 %v784, %v783
          %v786 = vmul.f32 0.5, %v785
          %v787 = vsub.f32 1.5, %v786
          %v788 = vmul.f32 %v783, %v787
          %vm789 = vweird.f32 %v721
          %vm790 = vweird.f32 %v783
          %vm791 = vmor %vm789, %vm790
          %v792 = vsel %vm791, %v783, %v788
          %v793 = vrsqrt.pop %v722
          %v794 = vmul.f32 %v793, %v722
          %v795 = vmul.f32 %v794, %v793
          %v796 = vmul.f32 0.5, %v795
          %v797 = vsub.f32 1.5, %v796
          %v798 = vmul.f32 %v793, %v797
          %vm799 = vweird.f32 %v722
          %vm800 = vweird.f32 %v793
          %vm801 = vmor %vm799, %vm800
          %v802 = vsel %vm801, %v793, %v798
          %v803 = vmul.f32 %v707, %v732
          %v804 = vmul.f32 %v708, %v742
          %v805 = vmul.f32 %v709, %v752
          %v806 = vmul.f32 %v710, %v762
          %v807 = vmul.f32 %v711, %v772
          %v808 = vmul.f32 %v712, %v782
          %v809 = vmul.f32 %v713, %v792
          %v810 = vmul.f32 %v714, %v802
          %811 = vst.msk [vmem:[#allocation4] sm:$0xff] %vm446, %v803
          %812 = vst.msk [vmem:[#allocation4 + $0x8] sm:$0xff] %vm446, %v804
          %813 = vst.msk [vmem:[#allocation4 + $0x10] sm:$0xff] %vm446, %v805
          %814 = vst.msk [vmem:[#allocation4 + $0x18] sm:$0xff] %vm446, %v806
          %815 = vst.msk [vmem:[#allocation4 + $0x20] sm:$0xff] %vm446, %v807
          %816 = vst.msk [vmem:[#allocation4 + $0x28] sm:$0xff] %vm446, %v808
          %817 = vst.msk [vmem:[#allocation4 + $0x30] sm:$0xff] %vm446, %v809
          %818 = vst.msk [vmem:[#allocation4 + $0x38] sm:$0xff] %vm446, %v810
          %v819 = vld [vmem:[%s6] sm:$0xff]
          %v820 = vld [vmem:[%s6 + $0x8] sm:$0xff]
          %v821 = vld [vmem:[%s6 + $0x10] sm:$0xff]
          %v822 = vld [vmem:[%s6 + $0x18] sm:$0xff]
          %v823 = vld [vmem:[%s6 + $0x20] sm:$0xff]
          %v824 = vld [vmem:[%s6 + $0x28] sm:$0xff]
          %v825 = vld [vmem:[%s6 + $0x30] sm:$0xff]
          %v826 = vld [vmem:[%s6 + $0x38] sm:$0xff]
          %v827 = vmul.f32 %v659, %v803
          %v828 = vmul.f32 %v660, %v804
          %v829 = vmul.f32 %v661, %v805
          %v830 = vmul.f32 %v662, %v806
          %v831 = vmul.f32 %v663, %v807
          %v832 = vmul.f32 %v664, %v808
          %v833 = vmul.f32 %v665, %v809
          %v834 = vmul.f32 %v666, %v810
          %v835 = vsub.f32 %v819, %v827
          %v836 = vsub.f32 %v820, %v828
          %v837 = vsub.f32 %v821, %v829
          %v838 = vsub.f32 %v822, %v830
          %v839 = vsub.f32 %v823, %v831
          %v840 = vsub.f32 %v824, %v832
          %v841 = vsub.f32 %v825, %v833
          %v842 = vsub.f32 %v826, %v834
          %843 = vst.msk [vmem:[#allocation5] sm:$0xff] %vm446, %v835
          %844 = vst.msk [vmem:[#allocation5 + $0x8] sm:$0xff] %vm446, %v836
          %845 = vst.msk [vmem:[#allocation5 + $0x10] sm:$0xff] %vm446, %v837
          %846 = vst.msk [vmem:[#allocation5 + $0x18] sm:$0xff] %vm446, %v838
          %847 = vst.msk [vmem:[#allocation5 + $0x20] sm:$0xff] %vm446, %v839
          %848 = vst.msk [vmem:[#allocation5 + $0x28] sm:$0xff] %vm446, %v840
          %849 = vst.msk [vmem:[#allocation5 + $0x30] sm:$0xff] %vm446, %v841
          %850 = vst.msk [vmem:[#allocation5 + $0x38] sm:$0xff] %vm446, %v842
        $region64: #{spatial_att_forward.1} parent=55 // pred_fallthru
          _
      $region56: #{spatial_att_forward.1} parent=51 // pred_fallthru
        _
      %p851 = scmp.eq.s32.totalorder %s24, 1
      // Predicated region
      $region65: #{spatial_att_forward.1} parent=51 // pred_check
        %p852 = pneg %p851
      $region66: #{spatial_att_forward.1} parent=51 // pred_check_branch
        %854 = sbr.rel (%p852) target = $region68
      $region67: #{spatial_att_forward.1} parent=51 // pred_region
        %v855 = vld [vmem:[#allocation4] sm:$0xff]
        %v856 = vld [vmem:[#allocation4 + $0x8] sm:$0xff]
        %v857 = vld [vmem:[#allocation4 + $0x10] sm:$0xff]
        %v858 = vld [vmem:[#allocation4 + $0x18] sm:$0xff]
        %v859 = vld [vmem:[#allocation4 + $0x20] sm:$0xff]
        %v860 = vld [vmem:[#allocation4 + $0x28] sm:$0xff]
        %v861 = vld [vmem:[#allocation4 + $0x30] sm:$0xff]
        %v862 = vld [vmem:[#allocation4 + $0x38] sm:$0xff]
        %v863 = vld [vmem:[#allocation5] sm:$0xff]
        %v864 = vld [vmem:[#allocation5 + $0x8] sm:$0xff]
        %v865 = vld [vmem:[#allocation5 + $0x10] sm:$0xff]
        %v866 = vld [vmem:[#allocation5 + $0x18] sm:$0xff]
        %v867 = vld [vmem:[#allocation5 + $0x20] sm:$0xff]
        %v868 = vld [vmem:[#allocation5 + $0x28] sm:$0xff]
        %v869 = vld [vmem:[#allocation5 + $0x30] sm:$0xff]
        %v870 = vld [vmem:[#allocation5 + $0x38] sm:$0xff]
        %s871 = sld [smem:[#allocation6]]
        %v872 = vld [vmem:[%s2] sm:$0xf]
        %v873 = vld [vmem:[%s2 + $0x4] sm:$0xf]
        %v874 = vld [vmem:[%s3] sm:$0xff]
        %v875 = vld [vmem:[%s3 + $0x8] sm:$0xff]
        %v876 = vld [vmem:[%s3 + $0x10] sm:$0xff]
        %v877 = vld [vmem:[%s3 + $0x18] sm:$0xff]
        %v878 = vld [vmem:[%s3 + $0x20] sm:$0xff]
        %v879 = vld [vmem:[%s3 + $0x28] sm:$0xff]
        %v880 = vld [vmem:[%s3 + $0x30] sm:$0xff]
        %v881 = vld [vmem:[%s3 + $0x38] sm:$0xff]
        %v882 = vld [vmem:[%s3 + $0x40] sm:$0xff]
        %v883 = vld [vmem:[%s3 + $0x48] sm:$0xff]
        %v884 = vld [vmem:[%s3 + $0x50] sm:$0xff]
        %v885 = vld [vmem:[%s3 + $0x58] sm:$0xff]
        %v886 = vld [vmem:[%s3 + $0x60] sm:$0xff]
        %v887 = vld [vmem:[%s3 + $0x68] sm:$0xff]
        %v888 = vld [vmem:[%s3 + $0x70] sm:$0xff]
        %v889 = vld [vmem:[%s3 + $0x78] sm:$0xff]
        %v890 = vld [vmem:[%s4] sm:$0xff]
        %v891 = vld [vmem:[%s4 + $0x8] sm:$0xff]
        %v892 = vld [vmem:[%s4 + $0x10] sm:$0xff]
        %v893 = vld [vmem:[%s4 + $0x18] sm:$0xff]
        %v894 = vld [vmem:[%s345] sm:$0xf]
        %v895 = vld [vmem:[%s345 + $0x4] sm:$0xf]
        %v896 = vld [vmem:[%s345 + $0x8] sm:$0xf]
        %v897 = vld [vmem:[%s345 + $0xc] sm:$0xf]
        %v898 = vld [vmem:[%s345 + $0x10] sm:$0xf]
        %v899 = vld [vmem:[%s345 + $0x14] sm:$0xf]
        %v900 = vld [vmem:[%s345 + $0x18] sm:$0xf]
        %v901 = vld [vmem:[%s345 + $0x1c] sm:$0xf]
        %v904 = vunpack.c.l.b16 %v872
        %v905 = vunpack.c.l.b16 %v873
        %v906 = vpack.c.b16 %v905, %v904
        %v915 = vunpack.c.l.b16 %v894
        %v916 = vunpack.c.l.b16 %v895
        %v917 = vunpack.c.l.b16 %v896
        %v918 = vunpack.c.l.b16 %v897
        %v919 = vunpack.c.l.b16 %v898
        %v920 = vunpack.c.l.b16 %v899
        %v921 = vunpack.c.l.b16 %v900
        %v922 = vunpack.c.l.b16 %v901
        %v923 = vpack.c.b16 %v916, %v915
        %v924 = vpack.c.b16 %v918, %v917
        %v925 = vpack.c.b16 %v920, %v919
        %v926 = vpack.c.b16 %v922, %v921
        %vm931 = vcmask 523264
        %v933 = vsel %vm931, %v906, 0
        %935 = vmatpush.bf16.msra.mxu0 0
        %936 = vmatpush.bf16.msra.mxu0 0
        %937 = vmatpush.bf16.msra.mxu0 0
        %938 = vmatpush.bf16.msra.mxu0 0
        %939 = vmatpush.bf16.msra.mxu0 %v926
        %940 = vmatpush.bf16.msra.mxu0 %v925
        %941 = vmatpush.bf16.msra.mxu0 %v924
        %942 = vmatpush.bf16.msra.mxu0 %v923
        %943 = vmatmul.bf16.gmra.mxu0 %v933
        %v944 = vpop.f32.mrf.mxu0
        %v945 = vadd.f32 0.0, %v944
        %v946 = vpop.f32.mrf.mxu0
        %v947 = vadd.f32 0.0, %v946
        %948 = vdwg.mxu0
        %v950 = vsel %vm931, %v945, 0
        %v953 = vsel %vm931, %v947, 0
        %955 = vmatpush.msra.mxu0 0.0
        %956 = vmatpush.msra.mxu0 0.0
        %957 = vmatpush.msra.mxu0 0.0
        %958 = vmatpush.msra.mxu0 0.0
        %959 = vmatpush.msra.mxu0 0.0
        %960 = vmatpush.msra.mxu0 0.0
        %961 = vmatpush.msra.mxu0 0.0
        %962 = vmatpush.msra.mxu0 0.0
        %963 = vmatpush.msra.mxu0 %v888
        %964 = vmatpush.msra.mxu0 %v886
        %965 = vmatpush.msra.mxu0 %v884
        %966 = vmatpush.msra.mxu0 %v882
        %967 = vmatpush.msra.mxu0 %v880
        %968 = vmatpush.msra.mxu0 %v878
        %969 = vmatpush.msra.mxu0 %v876
        %970 = vmatpush.msra.mxu0 %v874
        %971 = vmatmul.f32.gmra.mxu0 %v950
        %v972 = vpop.f32.mrf.mxu0
        %v973 = vadd.f32 0.0, %v972
        %974 = vmatmul.f32.gmra.mxu0 %v953
        %v975 = vpop.f32.mrf.mxu0
        %v976 = vadd.f32 0.0, %v975
        %977 = vdwg.mxu0
        %978 = vmatpush.msra.mxu0 0.0
        %979 = vmatpush.msra.mxu0 0.0
        %980 = vmatpush.msra.mxu0 0.0
        %981 = vmatpush.msra.mxu0 0.0
        %982 = vmatpush.msra.mxu0 0.0
        %983 = vmatpush.msra.mxu0 0.0
        %984 = vmatpush.msra.mxu0 0.0
        %985 = vmatpush.msra.mxu0 0.0
        %986 = vmatpush.msra.mxu0 %v889
        %987 = vmatpush.msra.mxu0 %v887
        %988 = vmatpush.msra.mxu0 %v885
        %989 = vmatpush.msra.mxu0 %v883
        %990 = vmatpush.msra.mxu0 %v881
        %991 = vmatpush.msra.mxu0 %v879
        %992 = vmatpush.msra.mxu0 %v877
        %993 = vmatpush.msra.mxu0 %v875
        %994 = vmatmul.f32.gmra.mxu0 %v950
        %v995 = vpop.f32.mrf.mxu0
        %v996 = vadd.f32 0.0, %v995
        %997 = vmatmul.f32.gmra.mxu0 %v953
        %v998 = vpop.f32.mrf.mxu0
        %v999 = vadd.f32 0.0, %v998
        %1000 = vdwg.mxu0
        %v1001 = vmul.f32 %v973, %v890
        %v1002 = vmul.f32 %v996, %v891
        %v1003 = vmul.f32 %v976, %v892
        %v1004 = vmul.f32 %v999, %v893
        %1005 = vrot.lane.b32.xlu0 %v1001, 17
        %v1006 = vpop.permute.xlu0 %1005
        %1007 = vrot.lane.b32.xlu0 %v1002, 17
        %v1008 = vpop.permute.xlu0 %1007
        %v1009 = vlaneseq
        %v1010 = vand.u32 %v1009, 127
        %vm1011 = vcmp.lt.s32.totalorder %v1010, 17
        %v1012 = vsel %vm1011, %v1006, %v1008
        %v1013 = vsel %vm1011, %v1008, %v1006
        %v1016 = vrot.slane %v1013, 4
        %v1017 = vrot.slane %v1012, 4
        %v1020 = vadd.f32 %v1001, %v1016
        %v1021 = vadd.f32 %v1002, %v1017
        %v1024 = vrot.slane %v1001, 1
        %v1025 = vrot.slane %v1002, 1
        %1028 = vrot.lane.b32.xlu0 %v1024, 16
        %v1029 = vpop.permute.xlu0 %1028
        %1030 = vrot.lane.b32.xlu0 %v1025, 16
        %v1031 = vpop.permute.xlu0 %1030
        %vm1032 = vcmp.lt.s32.totalorder %v1010, 16
        %v1033 = vsel %vm1032, %v1029, %v1031
        %v1034 = vsel %vm1032, %v1031, %v1029
        %v1037 = vrot.slane %v1034, 4
        %v1038 = vrot.slane %v1033, 4
        %v1041 = vadd.f32 %v1020, %v1037
        %v1042 = vadd.f32 %v1021, %v1038
        %v1043 = vrot.slane %v1001, 2
        %v1044 = vrot.slane %v1002, 2
        %1047 = vrot.lane.b32.xlu0 %v1043, 15
        %v1048 = vpop.permute.xlu0 %1047
        %1049 = vrot.lane.b32.xlu0 %v1044, 15
        %v1050 = vpop.permute.xlu0 %1049
        %vm1051 = vcmp.lt.s32.totalorder %v1010, 15
        %v1052 = vsel %vm1051, %v1048, %v1050
        %v1053 = vsel %vm1051, %v1050, %v1048
        %v1056 = vrot.slane %v1053, 4
        %v1057 = vrot.slane %v1052, 4
        %v1060 = vadd.f32 %v1041, %v1056
        %v1061 = vadd.f32 %v1042, %v1057
        %v1062 = vrot.slane %v1001, 3
        %v1063 = vrot.slane %v1002, 3
        %1066 = vrot.lane.b32.xlu0 %v1062, 1
        %v1067 = vpop.permute.xlu0 %1066
        %1068 = vrot.lane.b32.xlu0 %v1063, 1
        %v1069 = vpop.permute.xlu0 %1068
        %vm1070 = vcmp.lt.s32.totalorder %v1010, 1
        %v1071 = vsel %vm1070, %v1067, %v1069
        %v1072 = vsel %vm1070, %v1069, %v1067
        %v1075 = vrot.slane %v1072, 4
        %v1076 = vrot.slane %v1071, 4
        %v1079 = vadd.f32 %v1060, %v1075
        %v1080 = vadd.f32 %v1061, %v1076
        %v1081 = vrot.slane %v1001, 5
        %v1082 = vrot.slane %v1002, 5
        %1085 = vrot.lane.b32.xlu0 %v1081, 127
        %v1086 = vpop.permute.xlu0 %1085
        %1087 = vrot.lane.b32.xlu0 %v1082, 127
        %v1088 = vpop.permute.xlu0 %1087
        %vm1089 = vcmp.lt.s32.totalorder %v1010, 127
        %v1090 = vsel %vm1089, %v1086, %v1088
        %v1091 = vsel %vm1089, %v1088, %v1086
        %v1094 = vrot.slane %v1090, 4
        %v1095 = vrot.slane %v1091, 4
        %v1098 = vadd.f32 %v1079, %v1094
        %v1099 = vadd.f32 %v1080, %v1095
        %v1100 = vrot.slane %v1001, 6
        %v1101 = vrot.slane %v1002, 6
        %1104 = vrot.lane.b32.xlu0 %v1100, 113
        %v1105 = vpop.permute.xlu0 %1104
        %1106 = vrot.lane.b32.xlu0 %v1101, 113
        %v1107 = vpop.permute.xlu0 %1106
        %vm1108 = vcmp.lt.s32.totalorder %v1010, 113
        %v1109 = vsel %vm1108, %v1105, %v1107
        %v1110 = vsel %vm1108, %v1107, %v1105
        %v1113 = vrot.slane %v1109, 4
        %v1114 = vrot.slane %v1110, 4
        %v1117 = vadd.f32 %v1098, %v1113
        %v1118 = vadd.f32 %v1099, %v1114
        %v1119 = vrot.slane %v1001, 7
        %v1120 = vrot.slane %v1002, 7
        %1123 = vrot.lane.b32.xlu0 %v1119, 112
        %v1124 = vpop.permute.xlu0 %1123
        %1125 = vrot.lane.b32.xlu0 %v1120, 112
        %v1126 = vpop.permute.xlu0 %1125
        %vm1127 = vcmp.lt.s32.totalorder %v1010, 112
        %v1128 = vsel %vm1127, %v1124, %v1126
        %v1129 = vsel %vm1127, %v1126, %v1124
        %v1132 = vrot.slane %v1128, 4
        %v1133 = vrot.slane %v1129, 4
        %v1136 = vadd.f32 %v1117, %v1132
        %v1137 = vadd.f32 %v1118, %v1133
        %1138 = vrot.lane.b32.xlu0 %v1003, 111
        %v1139 = vpop.permute.xlu0 %1138
        %1140 = vrot.lane.b32.xlu0 %v1004, 111
        %v1141 = vpop.permute.xlu0 %1140
        %vm1142 = vcmp.lt.s32.totalorder %v1010, 111
        %v1143 = vsel %vm1142, %v1139, %v1141
        %v1144 = vsel %vm1142, %v1141, %v1139
        %v1147 = vrot.slane %v1143, 4
        %v1148 = vrot.slane %v1144, 4
        %v1151 = vadd.f32 %v1136, %v1147
        %v1152 = vadd.f32 %v1137, %v1148
        %v1153 = vstv %s871
        %v1154 = vadd.f32 %v1151, %v1153
        %v1155 = vadd.f32 %v1152, %v1153
        %v1156 = vxor.u32 %v1154, 2147483648
        %v1157 = vxor.u32 %v1155, 2147483648
        %v1158 = vmul.f32 %v1156, 1.442695
        %v1159 = vpow.pop %v1158
        %v1160 = vmul.f32 %v1157, 1.442695
        %v1161 = vpow.pop %v1160
        %v1162 = vadd.f32 %v1159, 1.0
        %v1163 = vadd.f32 %v1161, 1.0
        %v1164 = vrcp.pop %v1162
        %v1165 = vmul.f32 %v1162, %v1164
        %v1166 = vsub.f32 1.0, %v1165
        %v1167 = vmul.f32 %v1164, %v1166
        %v1168 = vadd.f32 %v1164, %v1167
        %vm1169 = vweird.f32 %v1162
        %vm1170 = vweird.f32 %v1164
        %vm1171 = vmor %vm1169, %vm1170
        %v1172 = vsel %vm1171, %v1164, %v1168
        %v1173 = vand.u32 2147483647, %v1162
        %vm1174 = vcmp.eq.f32.partialorder %v1173, 8.507059e+37
        %v1175 = vand.u32 %v1162, 2147483648
        %v1176 = vor.u32 1.1754944e-38, %v1175
        %v1177 = vsel %vm1174, %v1176, %v1172
        %v1178 = vmul.f32 1.0, %v1177
        %v1179 = vrcp.pop %v1163
        %v1180 = vmul.f32 %v1163, %v1179
        %v1181 = vsub.f32 1.0, %v1180
        %v1182 = vmul.f32 %v1179, %v1181
        %v1183 = vadd.f32 %v1179, %v1182
        %vm1184 = vweird.f32 %v1163
        %vm1185 = vweird.f32 %v1179
        %vm1186 = vmor %vm1184, %vm1185
        %v1187 = vsel %vm1186, %v1179, %v1183
        %v1188 = vand.u32 2147483647, %v1163
        %vm1189 = vcmp.eq.f32.partialorder %v1188, 8.507059e+37
        %v1190 = vand.u32 %v1163, 2147483648
        %v1191 = vor.u32 1.1754944e-38, %v1190
        %v1192 = vsel %vm1189, %v1191, %v1187
        %v1193 = vmul.f32 1.0, %v1192
        %v1194 = vld [vmem:[%s353] sm:$0xff]
        %v1195 = vld [vmem:[%s353 + $0x8] sm:$0xff]
        %v1196 = vld [vmem:[%s353 + $0x10] sm:$0xff]
        %v1197 = vld [vmem:[%s353 + $0x18] sm:$0xff]
        %v1198 = vld [vmem:[%s353 + $0x20] sm:$0xff]
        %v1199 = vld [vmem:[%s353 + $0x28] sm:$0xff]
        %v1200 = vld [vmem:[%s353 + $0x30] sm:$0xff]
        %v1201 = vld [vmem:[%s353 + $0x38] sm:$0xff]
        %v1202 = vld [vmem:[%s353 + $0x40] sm:$0xff]
        %v1203 = vld [vmem:[%s353 + $0x48] sm:$0xff]
        %v1204 = vld [vmem:[%s353 + $0x50] sm:$0xff]
        %v1205 = vld [vmem:[%s353 + $0x58] sm:$0xff]
        %v1206 = vld [vmem:[%s353 + $0x60] sm:$0xff]
        %v1207 = vld [vmem:[%s353 + $0x68] sm:$0xff]
        %v1208 = vld [vmem:[%s353 + $0x70] sm:$0xff]
        %v1209 = vld [vmem:[%s353 + $0x78] sm:$0xff]
        %1211 = vset.pattern.permute.xlu0 0
        %1212 = vperm.xlu0 %1211, %v855
        %v1213 = vpop.permute.xlu0 %1212
        %1216 = vset.pattern.permute.xlu0 0
        %1217 = vperm.xlu0 %1216, %v856
        %v1218 = vpop.permute.xlu0 %1217
        %1221 = vset.pattern.permute.xlu0 0
        %1222 = vperm.xlu0 %1221, %v857
        %v1223 = vpop.permute.xlu0 %1222
        %1226 = vset.pattern.permute.xlu0 0
        %1227 = vperm.xlu0 %1226, %v858
        %v1228 = vpop.permute.xlu0 %1227
        %1231 = vset.pattern.permute.xlu0 0
        %1232 = vperm.xlu0 %1231, %v859
        %v1233 = vpop.permute.xlu0 %1232
        %1236 = vset.pattern.permute.xlu0 0
        %1237 = vperm.xlu0 %1236, %v860
        %v1238 = vpop.permute.xlu0 %1237
        %1241 = vset.pattern.permute.xlu0 0
        %1242 = vperm.xlu0 %1241, %v861
        %v1243 = vpop.permute.xlu0 %1242
        %1246 = vset.pattern.permute.xlu0 0
        %1247 = vperm.xlu0 %1246, %v862
        %v1248 = vpop.permute.xlu0 %1247
        %v1250 = vmul.f32 %v1194, %v1213
        %v1251 = vmul.f32 %v1195, %v1213
        %v1252 = vmul.f32 %v1196, %v1218
        %v1253 = vmul.f32 %v1197, %v1218
        %v1254 = vmul.f32 %v1198, %v1223
        %v1255 = vmul.f32 %v1199, %v1223
        %v1256 = vmul.f32 %v1200, %v1228
        %v1257 = vmul.f32 %v1201, %v1228
        %v1258 = vmul.f32 %v1202, %v1233
        %v1259 = vmul.f32 %v1203, %v1233
        %v1260 = vmul.f32 %v1204, %v1238
        %v1261 = vmul.f32 %v1205, %v1238
        %v1262 = vmul.f32 %v1206, %v1243
        %v1263 = vmul.f32 %v1207, %v1243
        %v1264 = vmul.f32 %v1208, %v1248
        %v1265 = vmul.f32 %v1209, %v1248
        %1267 = vset.pattern.permute.xlu0 0
        %1268 = vperm.xlu0 %1267, %v863
        %v1269 = vpop.permute.xlu0 %1268
        %1272 = vset.pattern.permute.xlu0 0
        %1273 = vperm.xlu0 %1272, %v864
        %v1274 = vpop.permute.xlu0 %1273
        %1277 = vset.pattern.permute.xlu0 0
        %1278 = vperm.xlu0 %1277, %v865
        %v1279 = vpop.permute.xlu0 %1278
        %1282 = vset.pattern.permute.xlu0 0
        %1283 = vperm.xlu0 %1282, %v866
        %v1284 = vpop.permute.xlu0 %1283
        %1287 = vset.pattern.permute.xlu0 0
        %1288 = vperm.xlu0 %1287, %v867
        %v1289 = vpop.permute.xlu0 %1288
        %1292 = vset.pattern.permute.xlu0 0
        %1293 = vperm.xlu0 %1292, %v868
        %v1294 = vpop.permute.xlu0 %1293
        %1297 = vset.pattern.permute.xlu0 0
        %1298 = vperm.xlu0 %1297, %v869
        %v1299 = vpop.permute.xlu0 %1298
        %1302 = vset.pattern.permute.xlu0 0
        %1303 = vperm.xlu0 %1302, %v870
        %v1304 = vpop.permute.xlu0 %1303
        %v1306 = vadd.f32 %v1250, %v1269
        %v1307 = vadd.f32 %v1251, %v1269
        %v1308 = vadd.f32 %v1252, %v1274
        %v1309 = vadd.f32 %v1253, %v1274
        %v1310 = vadd.f32 %v1254, %v1279
        %v1311 = vadd.f32 %v1255, %v1279
        %v1312 = vadd.f32 %v1256, %v1284
        %v1313 = vadd.f32 %v1257, %v1284
        %v1314 = vadd.f32 %v1258, %v1289
        %v1315 = vadd.f32 %v1259, %v1289
        %v1316 = vadd.f32 %v1260, %v1294
        %v1317 = vadd.f32 %v1261, %v1294
        %v1318 = vadd.f32 %v1262, %v1299
        %v1319 = vadd.f32 %v1263, %v1299
        %v1320 = vadd.f32 %v1264, %v1304
        %v1321 = vadd.f32 %v1265, %v1304
        %v1322 = vmax.f32 %v1306, 0.0
        %v1323 = vmax.f32 %v1307, 0.0
        %v1324 = vmax.f32 %v1308, 0.0
        %v1325 = vmax.f32 %v1309, 0.0
        %v1326 = vmax.f32 %v1310, 0.0
        %v1327 = vmax.f32 %v1311, 0.0
        %v1328 = vmax.f32 %v1312, 0.0
        %v1329 = vmax.f32 %v1313, 0.0
        %v1330 = vmax.f32 %v1314, 0.0
        %v1331 = vmax.f32 %v1315, 0.0
        %v1332 = vmax.f32 %v1316, 0.0
        %v1333 = vmax.f32 %v1317, 0.0
        %v1334 = vmax.f32 %v1318, 0.0
        %v1335 = vmax.f32 %v1319, 0.0
        %v1336 = vmax.f32 %v1320, 0.0
        %v1337 = vmax.f32 %v1321, 0.0
        %v1338 = vperm.slane %v1178, 4
        %v1339 = vperm.slane %v1193, 4
        %v1340 = vmul.f32 %v1322, %v1338
        %v1341 = vmul.f32 %v1323, %v1339
        %v1342 = vmul.f32 %v1324, %v1338
        %v1343 = vmul.f32 %v1325, %v1339
        %v1344 = vmul.f32 %v1326, %v1338
        %v1345 = vmul.f32 %v1327, %v1339
        %v1346 = vmul.f32 %v1328, %v1338
        %v1347 = vmul.f32 %v1329, %v1339
        %v1348 = vmul.f32 %v1330, %v1338
        %v1349 = vmul.f32 %v1331, %v1339
        %v1350 = vmul.f32 %v1332, %v1338
        %v1351 = vmul.f32 %v1333, %v1339
        %v1352 = vmul.f32 %v1334, %v1338
        %v1353 = vmul.f32 %v1335, %v1339
        %v1354 = vmul.f32 %v1336, %v1338
        %v1355 = vmul.f32 %v1337, %v1339
        %1356 = vst [vmem:[%s361] sm:$0xff] %v1340
        %1357 = vst [vmem:[%s361 + $0x8] sm:$0xff] %v1341
        %1358 = vst [vmem:[%s361 + $0x10] sm:$0xff] %v1342
        %1359 = vst [vmem:[%s361 + $0x18] sm:$0xff] %v1343
        %1360 = vst [vmem:[%s361 + $0x20] sm:$0xff] %v1344
        %1361 = vst [vmem:[%s361 + $0x28] sm:$0xff] %v1345
        %1362 = vst [vmem:[%s361 + $0x30] sm:$0xff] %v1346
        %1363 = vst [vmem:[%s361 + $0x38] sm:$0xff] %v1347
        %1364 = vst [vmem:[%s361 + $0x40] sm:$0xff] %v1348
        %1365 = vst [vmem:[%s361 + $0x48] sm:$0xff] %v1349
        %1366 = vst [vmem:[%s361 + $0x50] sm:$0xff] %v1350
        %1367 = vst [vmem:[%s361 + $0x58] sm:$0xff] %v1351
        %1368 = vst [vmem:[%s361 + $0x60] sm:$0xff] %v1352
        %1369 = vst [vmem:[%s361 + $0x68] sm:$0xff] %v1353
        %1370 = vst [vmem:[%s361 + $0x70] sm:$0xff] %v1354
        %1371 = vst [vmem:[%s361 + $0x78] sm:$0xff] %v1355
        %s1372 = scalar_lea.vmem %s345, 32
        %v1373 = vld [vmem:[%s1372] sm:$0xf]
        %v1374 = vld [vmem:[%s1372 + $0x4] sm:$0xf]
        %v1375 = vld [vmem:[%s1372 + $0x8] sm:$0xf]
        %v1376 = vld [vmem:[%s1372 + $0xc] sm:$0xf]
        %v1377 = vld [vmem:[%s1372 + $0x10] sm:$0xf]
        %v1378 = vld [vmem:[%s1372 + $0x14] sm:$0xf]
        %v1379 = vld [vmem:[%s1372 + $0x18] sm:$0xf]
        %v1380 = vld [vmem:[%s1372 + $0x1c] sm:$0xf]
        %v1389 = vunpack.c.l.b16 %v1373
        %v1390 = vunpack.c.l.b16 %v1374
        %v1391 = vunpack.c.l.b16 %v1375
        %v1392 = vunpack.c.l.b16 %v1376
        %v1393 = vunpack.c.l.b16 %v1377
        %v1394 = vunpack.c.l.b16 %v1378
        %v1395 = vunpack.c.l.b16 %v1379
        %v1396 = vunpack.c.l.b16 %v1380
        %v1397 = vpack.c.b16 %v1390, %v1389
        %v1398 = vpack.c.b16 %v1392, %v1391
        %v1399 = vpack.c.b16 %v1394, %v1393
        %v1400 = vpack.c.b16 %v1396, %v1395
        %1405 = vmatpush.bf16.msra.mxu0 0
        %1406 = vmatpush.bf16.msra.mxu0 0
        %1407 = vmatpush.bf16.msra.mxu0 0
        %1408 = vmatpush.bf16.msra.mxu0 0
        %1409 = vmatpush.bf16.msra.mxu0 %v1400
        %1410 = vmatpush.bf16.msra.mxu0 %v1399
        %1411 = vmatpush.bf16.msra.mxu0 %v1398
        %1412 = vmatpush.bf16.msra.mxu0 %v1397
        %1413 = vmatmul.bf16.gmra.mxu0 %v933
        %v1414 = vpop.f32.mrf.mxu0
        %v1415 = vadd.f32 0.0, %v1414
        %v1416 = vpop.f32.mrf.mxu0
        %v1417 = vadd.f32 0.0, %v1416
        %1418 = vdwg.mxu0
        %v1420 = vsel %vm931, %v1415, 0
        %v1423 = vsel %vm931, %v1417, 0
        %1425 = vmatpush.msra.mxu0 0.0
        %1426 = vmatpush.msra.mxu0 0.0
        %1427 = vmatpush.msra.mxu0 0.0
        %1428 = vmatpush.msra.mxu0 0.0
        %1429 = vmatpush.msra.mxu0 0.0
        %1430 = vmatpush.msra.mxu0 0.0
        %1431 = vmatpush.msra.mxu0 0.0
        %1432 = vmatpush.msra.mxu0 0.0
        %1433 = vmatpush.msra.mxu0 %v888
        %1434 = vmatpush.msra.mxu0 %v886
        %1435 = vmatpush.msra.mxu0 %v884
        %1436 = vmatpush.msra.mxu0 %v882
        %1437 = vmatpush.msra.mxu0 %v880
        %1438 = vmatpush.msra.mxu0 %v878
        %1439 = vmatpush.msra.mxu0 %v876
        %1440 = vmatpush.msra.mxu0 %v874
        %1441 = vmatmul.f32.gmra.mxu0 %v1420
        %v1442 = vpop.f32.mrf.mxu0
        %v1443 = vadd.f32 0.0, %v1442
        %1444 = vmatmul.f32.gmra.mxu0 %v1423
        %v1445 = vpop.f32.mrf.mxu0
        %v1446 = vadd.f32 0.0, %v1445
        %1447 = vdwg.mxu0
        %1448 = vmatpush.msra.mxu0 0.0
        %1449 = vmatpush.msra.mxu0 0.0
        %1450 = vmatpush.msra.mxu0 0.0
        %1451 = vmatpush.msra.mxu0 0.0
        %1452 = vmatpush.msra.mxu0 0.0
        %1453 = vmatpush.msra.mxu0 0.0
        %1454 = vmatpush.msra.mxu0 0.0
        %1455 = vmatpush.msra.mxu0 0.0
        %1456 = vmatpush.msra.mxu0 %v889
        %1457 = vmatpush.msra.mxu0 %v887
        %1458 = vmatpush.msra.mxu0 %v885
        %1459 = vmatpush.msra.mxu0 %v883
        %1460 = vmatpush.msra.mxu0 %v881
        %1461 = vmatpush.msra.mxu0 %v879
        %1462 = vmatpush.msra.mxu0 %v877
        %1463 = vmatpush.msra.mxu0 %v875
        %1464 = vmatmul.f32.gmra.mxu0 %v1420
        %v1465 = vpop.f32.mrf.mxu0
        %v1466 = vadd.f32 0.0, %v1465
        %1467 = vmatmul.f32.gmra.mxu0 %v1423
        %v1468 = vpop.f32.mrf.mxu0
        %v1469 = vadd.f32 0.0, %v1468
        %1470 = vdwg.mxu0
        %v1471 = vmul.f32 %v1443, %v890
        %v1472 = vmul.f32 %v1466, %v891
        %v1473 = vmul.f32 %v1446, %v892
        %v1474 = vmul.f32 %v1469, %v893
        %1475 = vrot.lane.b32.xlu0 %v1471, 17
        %v1476 = vpop.permute.xlu0 %1475
        %1477 = vrot.lane.b32.xlu0 %v1472, 17
        %v1478 = vpop.permute.xlu0 %1477
        %v1479 = vsel %vm1011, %v1476, %v1478
        %v1480 = vsel %vm1011, %v1478, %v1476
        %v1483 = vrot.slane %v1480, 4
        %v1484 = vrot.slane %v1479, 4
        %v1487 = vadd.f32 %v1471, %v1483
        %v1488 = vadd.f32 %v1472, %v1484
        %v1491 = vrot.slane %v1471, 1
        %v1492 = vrot.slane %v1472, 1
        %1495 = vrot.lane.b32.xlu0 %v1491, 16
        %v1496 = vpop.permute.xlu0 %1495
        %1497 = vrot.lane.b32.xlu0 %v1492, 16
        %v1498 = vpop.permute.xlu0 %1497
        %v1499 = vsel %vm1032, %v1496, %v1498
        %v1500 = vsel %vm1032, %v1498, %v1496
        %v1503 = vrot.slane %v1500, 4
        %v1504 = vrot.slane %v1499, 4
        %v1507 = vadd.f32 %v1487, %v1503
        %v1508 = vadd.f32 %v1488, %v1504
        %v1509 = vrot.slane %v1471, 2
        %v1510 = vrot.slane %v1472, 2
        %1513 = vrot.lane.b32.xlu0 %v1509, 15
        %v1514 = vpop.permute.xlu0 %1513
        %1515 = vrot.lane.b32.xlu0 %v1510, 15
        %v1516 = vpop.permute.xlu0 %1515
        %v1517 = vsel %vm1051, %v1514, %v1516
        %v1518 = vsel %vm1051, %v1516, %v1514
        %v1521 = vrot.slane %v1518, 4
        %v1522 = vrot.slane %v1517, 4
        %v1525 = vadd.f32 %v1507, %v1521
        %v1526 = vadd.f32 %v1508, %v1522
        %v1527 = vrot.slane %v1471, 3
        %v1528 = vrot.slane %v1472, 3
        %1531 = vrot.lane.b32.xlu0 %v1527, 1
        %v1532 = vpop.permute.xlu0 %1531
        %1533 = vrot.lane.b32.xlu0 %v1528, 1
        %v1534 = vpop.permute.xlu0 %1533
        %v1535 = vsel %vm1070, %v1532, %v1534
        %v1536 = vsel %vm1070, %v1534, %v1532
        %v1539 = vrot.slane %v1536, 4
        %v1540 = vrot.slane %v1535, 4
        %v1543 = vadd.f32 %v1525, %v1539
        %v1544 = vadd.f32 %v1526, %v1540
        %v1545 = vrot.slane %v1471, 5
        %v1546 = vrot.slane %v1472, 5
        %1549 = vrot.lane.b32.xlu0 %v1545, 127
        %v1550 = vpop.permute.xlu0 %1549
        %1551 = vrot.lane.b32.xlu0 %v1546, 127
        %v1552 = vpop.permute.xlu0 %1551
        %v1553 = vsel %vm1089, %v1550, %v1552
        %v1554 = vsel %vm1089, %v1552, %v1550
        %v1557 = vrot.slane %v1553, 4
        %v1558 = vrot.slane %v1554, 4
        %v1561 = vadd.f32 %v1543, %v1557
        %v1562 = vadd.f32 %v1544, %v1558
        %v1563 = vrot.slane %v1471, 6
        %v1564 = vrot.slane %v1472, 6
        %1567 = vrot.lane.b32.xlu0 %v1563, 113
        %v1568 = vpop.permute.xlu0 %1567
        %1569 = vrot.lane.b32.xlu0 %v1564, 113
        %v1570 = vpop.permute.xlu0 %1569
        %v1571 = vsel %vm1108, %v1568, %v1570
        %v1572 = vsel %vm1108, %v1570, %v1568
        %v1575 = vrot.slane %v1571, 4
        %v1576 = vrot.slane %v1572, 4
        %v1579 = vadd.f32 %v1561, %v1575
        %v1580 = vadd.f32 %v1562, %v1576
        %v1581 = vrot.slane %v1471, 7
        %v1582 = vrot.slane %v1472, 7
        %1585 = vrot.lane.b32.xlu0 %v1581, 112
        %v1586 = vpop.permute.xlu0 %1585
        %1587 = vrot.lane.b32.xlu0 %v1582, 112
        %v1588 = vpop.permute.xlu0 %1587
        %v1589 = vsel %vm1127, %v1586, %v1588
        %v1590 = vsel %vm1127, %v1588, %v1586
        %v1593 = vrot.slane %v1589, 4
        %v1594 = vrot.slane %v1590, 4
        %v1597 = vadd.f32 %v1579, %v1593
        %v1598 = vadd.f32 %v1580, %v1594
        %1599 = vrot.lane.b32.xlu0 %v1473, 111
        %v1600 = vpop.permute.xlu0 %1599
        %1601 = vrot.lane.b32.xlu0 %v1474, 111
        %v1602 = vpop.permute.xlu0 %1601
        %v1603 = vsel %vm1142, %v1600, %v1602
        %v1604 = vsel %vm1142, %v1602, %v1600
        %v1607 = vrot.slane %v1603, 4
        %v1608 = vrot.slane %v1604, 4
        %v1611 = vadd.f32 %v1597, %v1607
        %v1612 = vadd.f32 %v1598, %v1608
        %v1613 = vadd.f32 %v1611, %v1153
        %v1614 = vadd.f32 %v1612, %v1153
        %v1615 = vxor.u32 %v1613, 2147483648
        %v1616 = vxor.u32 %v1614, 2147483648
        %v1617 = vmul.f32 %v1615, 1.442695
        %v1618 = vpow.pop %v1617
        %v1619 = vmul.f32 %v1616, 1.442695
        %v1620 = vpow.pop %v1619
        %v1621 = vadd.f32 %v1618, 1.0
        %v1622 = vadd.f32 %v1620, 1.0
        %v1623 = vrcp.pop %v1621
        %v1624 = vmul.f32 %v1621, %v1623
        %v1625 = vsub.f32 1.0, %v1624
        %v1626 = vmul.f32 %v1623, %v1625
        %v1627 = vadd.f32 %v1623, %v1626
        %vm1628 = vweird.f32 %v1621
        %vm1629 = vweird.f32 %v1623
        %vm1630 = vmor %vm1628, %vm1629
        %v1631 = vsel %vm1630, %v1623, %v1627
        %v1632 = vand.u32 2147483647, %v1621
        %vm1633 = vcmp.eq.f32.partialorder %v1632, 8.507059e+37
        %v1634 = vand.u32 %v1621, 2147483648
        %v1635 = vor.u32 1.1754944e-38, %v1634
        %v1636 = vsel %vm1633, %v1635, %v1631
        %v1637 = vmul.f32 1.0, %v1636
        %v1638 = vrcp.pop %v1622
        %v1639 = vmul.f32 %v1622, %v1638
        %v1640 = vsub.f32 1.0, %v1639
        %v1641 = vmul.f32 %v1638, %v1640
        %v1642 = vadd.f32 %v1638, %v1641
        %vm1643 = vweird.f32 %v1622
        %vm1644 = vweird.f32 %v1638
        %vm1645 = vmor %vm1643, %vm1644
        %v1646 = vsel %vm1645, %v1638, %v1642
        %v1647 = vand.u32 2147483647, %v1622
        %vm1648 = vcmp.eq.f32.partialorder %v1647, 8.507059e+37
        %v1649 = vand.u32 %v1622, 2147483648
        %v1650 = vor.u32 1.1754944e-38, %v1649
        %v1651 = vsel %vm1648, %v1650, %v1646
        %v1652 = vmul.f32 1.0, %v1651
        %s1653 = scalar_lea.vmem %s353, 128
        %v1654 = vld [vmem:[%s1653] sm:$0xff]
        %v1655 = vld [vmem:[%s1653 + $0x8] sm:$0xff]
        %v1656 = vld [vmem:[%s1653 + $0x10] sm:$0xff]
        %v1657 = vld [vmem:[%s1653 + $0x18] sm:$0xff]
        %v1658 = vld [vmem:[%s1653 + $0x20] sm:$0xff]
        %v1659 = vld [vmem:[%s1653 + $0x28] sm:$0xff]
        %v1660 = vld [vmem:[%s1653 + $0x30] sm:$0xff]
        %v1661 = vld [vmem:[%s1653 + $0x38] sm:$0xff]
        %v1662 = vld [vmem:[%s1653 + $0x40] sm:$0xff]
        %v1663 = vld [vmem:[%s1653 + $0x48] sm:$0xff]
        %v1664 = vld [vmem:[%s1653 + $0x50] sm:$0xff]
        %v1665 = vld [vmem:[%s1653 + $0x58] sm:$0xff]
        %v1666 = vld [vmem:[%s1653 + $0x60] sm:$0xff]
        %v1667 = vld [vmem:[%s1653 + $0x68] sm:$0xff]
        %v1668 = vld [vmem:[%s1653 + $0x70] sm:$0xff]
        %v1669 = vld [vmem:[%s1653 + $0x78] sm:$0xff]
        %v1670 = vmul.f32 %v1654, %v1213
        %v1671 = vmul.f32 %v1655, %v1213
        %v1672 = vmul.f32 %v1656, %v1218
        %v1673 = vmul.f32 %v1657, %v1218
        %v1674 = vmul.f32 %v1658, %v1223
        %v1675 = vmul.f32 %v1659, %v1223
        %v1676 = vmul.f32 %v1660, %v1228
        %v1677 = vmul.f32 %v1661, %v1228
        %v1678 = vmul.f32 %v1662, %v1233
        %v1679 = vmul.f32 %v1663, %v1233
        %v1680 = vmul.f32 %v1664, %v1238
        %v1681 = vmul.f32 %v1665, %v1238
        %v1682 = vmul.f32 %v1666, %v1243
        %v1683 = vmul.f32 %v1667, %v1243
        %v1684 = vmul.f32 %v1668, %v1248
        %v1685 = vmul.f32 %v1669, %v1248
        %v1686 = vadd.f32 %v1670, %v1269
        %v1687 = vadd.f32 %v1671, %v1269
        %v1688 = vadd.f32 %v1672, %v1274
        %v1689 = vadd.f32 %v1673, %v1274
        %v1690 = vadd.f32 %v1674, %v1279
        %v1691 = vadd.f32 %v1675, %v1279
        %v1692 = vadd.f32 %v1676, %v1284
        %v1693 = vadd.f32 %v1677, %v1284
        %v1694 = vadd.f32 %v1678, %v1289
        %v1695 = vadd.f32 %v1679, %v1289
        %v1696 = vadd.f32 %v1680, %v1294
        %v1697 = vadd.f32 %v1681, %v1294
        %v1698 = vadd.f32 %v1682, %v1299
        %v1699 = vadd.f32 %v1683, %v1299
        %v1700 = vadd.f32 %v1684, %v1304
        %v1701 = vadd.f32 %v1685, %v1304
        %v1702 = vmax.f32 %v1686, 0.0
        %v1703 = vmax.f32 %v1687, 0.0
        %v1704 = vmax.f32 %v1688, 0.0
        %v1705 = vmax.f32 %v1689, 0.0
        %v1706 = vmax.f32 %v1690, 0.0
        %v1707 = vmax.f32 %v1691, 0.0
        %v1708 = vmax.f32 %v1692, 0.0
        %v1709 = vmax.f32 %v1693, 0.0
        %v1710 = vmax.f32 %v1694, 0.0
        %v1711 = vmax.f32 %v1695, 0.0
        %v1712 = vmax.f32 %v1696, 0.0
        %v1713 = vmax.f32 %v1697, 0.0
        %v1714 = vmax.f32 %v1698, 0.0
        %v1715 = vmax.f32 %v1699, 0.0
        %v1716 = vmax.f32 %v1700, 0.0
        %v1717 = vmax.f32 %v1701, 0.0
        %v1718 = vperm.slane %v1637, 4
        %v1719 = vperm.slane %v1652, 4
        %v1720 = vmul.f32 %v1702, %v1718
        %v1721 = vmul.f32 %v1703, %v1719
        %v1722 = vmul.f32 %v1704, %v1718
        %v1723 = vmul.f32 %v1705, %v1719
        %v1724 = vmul.f32 %v1706, %v1718
        %v1725 = vmul.f32 %v1707, %v1719
        %v1726 = vmul.f32 %v1708, %v1718
        %v1727 = vmul.f32 %v1709, %v1719
        %v1728 = vmul.f32 %v1710, %v1718
        %v1729 = vmul.f32 %v1711, %v1719
        %v1730 = vmul.f32 %v1712, %v1718
        %v1731 = vmul.f32 %v1713, %v1719
        %v1732 = vmul.f32 %v1714, %v1718
        %v1733 = vmul.f32 %v1715, %v1719
        %v1734 = vmul.f32 %v1716, %v1718
        %v1735 = vmul.f32 %v1717, %v1719
        %s1736 = scalar_lea.vmem %s361, 128
        %1737 = vst [vmem:[%s1736] sm:$0xff] %v1720
        %1738 = vst [vmem:[%s1736 + $0x8] sm:$0xff] %v1721
        %1739 = vst [vmem:[%s1736 + $0x10] sm:$0xff] %v1722
        %1740 = vst [vmem:[%s1736 + $0x18] sm:$0xff] %v1723
        %1741 = vst [vmem:[%s1736 + $0x20] sm:$0xff] %v1724
        %1742 = vst [vmem:[%s1736 + $0x28] sm:$0xff] %v1725
        %1743 = vst [vmem:[%s1736 + $0x30] sm:$0xff] %v1726
        %1744 = vst [vmem:[%s1736 + $0x38] sm:$0xff] %v1727
        %1745 = vst [vmem:[%s1736 + $0x40] sm:$0xff] %v1728
        %1746 = vst [vmem:[%s1736 + $0x48] sm:$0xff] %v1729
        %1747 = vst [vmem:[%s1736 + $0x50] sm:$0xff] %v1730
        %1748 = vst [vmem:[%s1736 + $0x58] sm:$0xff] %v1731
        %1749 = vst [vmem:[%s1736 + $0x60] sm:$0xff] %v1732
        %1750 = vst [vmem:[%s1736 + $0x68] sm:$0xff] %v1733
        %1751 = vst [vmem:[%s1736 + $0x70] sm:$0xff] %v1734
        %1752 = vst [vmem:[%s1736 + $0x78] sm:$0xff] %v1735
      $region68: #{spatial_att_forward.1} parent=51 // pred_fallthru
        _
      %s1753 = smul.u32 %s24, %s25
      %s1754 = smul.u32 2, %s1753
      %p1755 = scmp.lt.s32.totalorder %s1754, 1
      %s1756 = scalar_select %p1755, %s1754, 1
      %s1757 = smul.addr %s1756, 16
      %s1758 = smul.addr %s1757, 8
      %s1759 = scalar_lea.vmem %s8, %s1758
      // Predicated region
      $region69: #{spatial_att_forward.1} parent=51 // pred_check
        %p1760 = pneg %p232
      $region70: #{spatial_att_forward.1} parent=51 // pred_check_branch
        %1762 = sbr.rel (%p1760) target = $region72
      $region71: #{spatial_att_forward.1} parent=51 // pred_region
        %s1763 = smul.u32 %s24, %s25
        %s1764 = smul.u32 2, %s1763
      $region72: #{spatial_att_forward.1} parent=51 // pred_fallthru
        _
    $region52: #{spatial_att_forward.1} parent=5 // pred_fallthru
      _
    %p1765 = scmp.le.s32.totalorder 2, %s15
    // Predicated region
    $region73: #{spatial_att_forward.1} parent=5 // pred_check
      %p1766 = pneg %p1765
    $region74: #{spatial_att_forward.1} parent=5 // pred_check_branch
      %1768 = sbr.rel (%p1766) target = $region76
    $region75: #{spatial_att_forward.1} parent=5 // pred_region
      %s1769 = ssub.s32 %s15, 2
      // Predicated region
      $region77: #{spatial_att_forward.1} parent=75 // pred_check
        %p1770 = pneg %p238
      $region78: #{spatial_att_forward.1} parent=75 // pred_check_branch
        %1772 = sbr.rel (%p1770) target = $region80
      $region79: #{spatial_att_forward.1} parent=75 // pred_region
        %s1773 = smul.u32 %s26, %s27
        %s1774 = smul.u32 2, %s1773
        %p1775 = scmp.lt.s32.totalorder %s1774, 1
        %s1776 = scalar_select %p1775, %s1774, 1
        %s1777 = smul.addr %s1776, 16
        %s1778 = smul.addr %s1777, 8
        %s1779 = scalar_lea.vmem %s8, %s1778
      $region80: #{spatial_att_forward.1} parent=75 // pred_fallthru
        _
    $region76: #{spatial_att_forward.1} parent=5 // pred_fallthru
      _
  $region6: #{spatial_att_forward.1} parent=0 // loop_footer
    %s19 = sadd.s32 1, %s15
  $region7: #{spatial_att_forward.1} parent=0 // loop_footer_branch
    %14 = sbr.rel target = $region3
  $region8: #{spatial_att_forward.1} parent=0 // loop_exit
    _

</llo_original>
